<compile_context>
chip_gen: v5e
topology: v5e:2x2
jax: 0.10.0
libtpu: 0.0.40
codegen_flags: <defaults>
</compile_context>

<pallas_src>
import jax
import jax.numpy as jnp
from jax.experimental import pallas as pl
from jax.experimental.pallas import tpu as pltpu


C_STEM = 32      # EfficientNet-B0 stem conv output channels
C_FEAT = 64      # classifier feature width stand-in
C_PAD = 128      # lane-dense padded channel width
N_CLS = 7


def make_params(key, c_in=1):
    """Deterministic synthetic parameters; shapes follow the module structure,
    channels zero-padded to C_PAD lanes so all kernel vregs are lane dense."""
    ks = jax.random.split(key, 8)

    # stem conv weight (PyTorch layout (C_out, C_in, 3, 3)), no bias, then BN.
    w_conv = jax.random.normal(ks[0], (C_STEM, c_in, 3, 3), jnp.float32) * 0.1
    gamma = 1.0 + 0.05 * jax.random.normal(ks[1], (C_STEM,), jnp.float32)
    beta = 0.05 * jax.random.normal(ks[2], (C_STEM,), jnp.float32)
    mean = 0.05 * jax.random.normal(ks[3], (C_STEM,), jnp.float32)
    var = jnp.abs(jax.random.normal(ks[4], (C_STEM,), jnp.float32)) + 1.0
    scale = gamma / jnp.sqrt(var + 1e-5)
    w_eff = w_conv * scale[:, None, None, None]              # BN folded into conv
    b_stem = beta - mean * scale                             # (C_STEM,)
    # tap-major rows: row index = (ky*3 + kx)*Cin + ci
    w_stem = jnp.transpose(w_eff, (2, 3, 1, 0)).reshape(9 * c_in, C_STEM)

    # pointwise projection ("conv_head"-style) to feature width.
    w_head = jax.random.normal(ks[5], (C_STEM, C_FEAT), jnp.float32) * 0.1
    b_head = jnp.zeros((C_FEAT,), jnp.float32)

    # fc: PyTorch Linear weight is (7, C_FEAT); store transposed for x @ W^T.
    w_fc_pt = jax.random.normal(ks[6], (N_CLS, C_FEAT), jnp.float32) * 0.1
    b_fc = jax.random.normal(ks[7], (N_CLS,), jnp.float32) * 0.01

    def pad_cols(a, n):
        return jnp.pad(a, ((0, 0), (0, n - a.shape[1])))

    def pad_rows(a, n):
        return jnp.pad(a, ((0, n - a.shape[0]), (0, 0)))

    return dict(
        w_stem=pad_cols(w_stem, C_PAD),                                        # (9*Cin,128) f32
        b_stem=jnp.pad(b_stem, (0, C_PAD - C_STEM))[None, :],                  # (1,128) f32
        w_head=pad_rows(pad_cols(w_head, C_PAD), C_PAD).astype(jnp.bfloat16),  # (128,128) bf16
        b_head=jnp.pad(b_head, (0, C_PAD - C_FEAT))[None, :],                  # (1,128) f32
        w_fc=pad_rows(pad_cols(jnp.transpose(w_fc_pt), C_PAD),
                      C_PAD).astype(jnp.bfloat16),                             # (128,128) bf16
        b_fc=jnp.pad(b_fc, (0, C_PAD - N_CLS))[None, :],                       # (1,128) f32
    )


def _make_kernel(h2, w2, c_in):
    """Fused features -> max-pool -> fc kernel for one batch element."""
    row_w = w2 + 1            # phase-plane row width (includes 1 gap column)
    L = h2 * row_w            # tap slice length (h2 rows of w2 valid + 1 gap)

    def kernel(phases_ref, w_stem_ref, b_stem_ref, w_head_ref, b_head_ref,
               w_fc_ref, b_fc_ref, out_ref):
        # ---- stem 3x3 stride-2 conv (BN folded): 9 shifted MACs on the VPU ----
        acc = jnp.broadcast_to(b_stem_ref[...], (L, C_PAD))         # (L,128) f32
        for t in range(9):
            ky, kx = t // 3, t % 3
            p = (ky % 2) * 2 + (kx % 2)                     # phase plane index
            s = (ky // 2) * row_w + (kx // 2)               # static sublane offset
            tap = phases_ref[p, s:s + L, :]                 # (L, Cin) f32, contiguous
            for ci in range(c_in):
                r = t * c_in + ci
                acc = acc + tap[:, ci:ci + 1] * w_stem_ref[r:r + 1, :]
        h = acc.astype(jnp.bfloat16)
        h = h * jax.nn.sigmoid(h)                                    # SiLU in bf16

        # ---- pointwise head projection (MXU, bf16 in / f32 accum) + SiLU ----
        f = jnp.dot(h, w_head_ref[...],
                    preferred_element_type=jnp.float32) + b_head_ref[...]
        f = f.astype(jnp.bfloat16)
        f = f * jax.nn.sigmoid(f)

        # ---- AdaptiveMaxPool2d(1): mask gap rows, single spatial max ----
        j = jax.lax.broadcasted_iota(jnp.int32, (L, 1), 0)
        valid = (j % row_w) < w2
        fa = jnp.where(valid, f.astype(jnp.float32), -jnp.inf)
        pooled = jnp.max(fa, axis=0, keepdims=True)                  # (1,128) f32

        # ---- fused fc head (MXU) ----
        out_ref[...] = (jnp.dot(pooled.astype(jnp.bfloat16), w_fc_ref[...],
                                preferred_element_type=jnp.float32)
                        + b_fc_ref[...])

    return kernel


@jax.jit
def img_model_forward(x_nchw, params):
    B, Cin, H, W = x_nchw.shape
    assert H % 2 == 0 and W % 2 == 0, "even spatial dims expected"
    H2, W2 = H // 2, W // 2
    Np = (H2 + 1) * (W2 + 1)
    Np_pad = ((Np + 1 + 7) // 8) * 8     # +1 for the (ky=2,kx=2) tap overrun

    # NCHW -> padded NHWC -> 4 stride-2 phase planes (phase[pr,pc][r,c]=xp[2r+pr,2c+pc]),
    # each flattened spatially.  Total HBM bytes ~= the input (no 9x im2col blow-up).
    x = jnp.transpose(x_nchw, (0, 2, 3, 1))                          # (B,H,W,Cin)
    xp = jnp.pad(x, ((0, 0), (1, 1), (1, 1), (0, 0)))                # (B,H+2,W+2,Cin)
    planes = [xp[:, pr::2, pc::2, :][:, :H2 + 1, :W2 + 1, :]
              for pr in (0, 1) for pc in (0, 1)]
    phases = jnp.stack(planes, axis=1).reshape(B, 4, Np, Cin)
    phases = jnp.pad(phases, ((0, 0), (0, 0), (0, Np_pad - Np), (0, 0)))
    phases = phases.astype(jnp.float32)                              # (B,4,Np_pad,Cin)

    kernel = _make_kernel(H2, W2, Cin)
    const = lambda b: (0, 0)

    out = pl.pallas_call(
        kernel,
        out_shape=jax.ShapeDtypeStruct((B, 1, C_PAD), jnp.float32),
        grid=(B,),
        in_specs=[
            pl.BlockSpec((None, 4, Np_pad, Cin), lambda b: (b, 0, 0, 0)),  # per-batch image
            pl.BlockSpec((9 * Cin, C_PAD), const),                         # weights: VMEM-resident
            pl.BlockSpec((1, C_PAD), const),
            pl.BlockSpec((C_PAD, C_PAD), const),
            pl.BlockSpec((1, C_PAD), const),
            pl.BlockSpec((C_PAD, C_PAD), const),
            pl.BlockSpec((1, C_PAD), const),
        ],
        out_specs=pl.BlockSpec((None, 1, C_PAD), lambda b: (b, 0, 0)),
        compiler_params=pltpu.CompilerParams(
            dimension_semantics=("parallel",),          # megacore over batch
            vmem_limit_bytes=32 * 1024 * 1024,
        ),
    )(phases, params["w_stem"], params["b_stem"], params["w_head"],
      params["b_head"], params["w_fc"], params["b_fc"])

    return out.reshape(B, C_PAD)[:, :N_CLS]


if __name__ == "__main__":
    key = jax.random.PRNGKey(0)
    k_x, k_p = jax.random.split(key)

    # in_chans=1 as in the module; small spatial size
    x = jax.random.normal(k_x, (2, 1, 16, 16), jnp.float32)   # NCHW like PyTorch
    params = make_params(k_p, c_in=1)

    out = img_model_forward(x, params)
    jax.block_until_ready(out)
    assert out.shape == (2, N_CLS) and out.dtype == jnp.float32
    print("KERNEL_OK")
</pallas_src>

<mosaic_0001>
module attributes {stable_mosaic.version = 11 : i64} {
  func.func @kernel(%arg0: i32, %arg1: memref<1x4x88x1xf32, #tpu.memory_space<vmem>>, %arg2: memref<9x128xf32, #tpu.memory_space<vmem>>, %arg3: memref<1x128xf32, #tpu.memory_space<vmem>>, %arg4: memref<128x128xbf16, #tpu.memory_space<vmem>>, %arg5: memref<1x128xf32, #tpu.memory_space<vmem>>, %arg6: memref<128x128xbf16, #tpu.memory_space<vmem>>, %arg7: memref<1x128xf32, #tpu.memory_space<vmem>>, %arg8: memref<1x1x128xf32, #tpu.memory_space<vmem>>) attributes {dimension_semantics = [#tpu.dimension_semantics<parallel>], iteration_bounds = array<i64: 2>, scalar_prefetch = 0 : i64, scratch_operands = 0 : i64, tpu.core_type = #tpu.core_type<tc>, window_params = [{transform_indices = @transform_0, window_bounds = array<i64: 1, 4, 88, 1>}, {pipeline_mode = #tpu.pipeline_mode<synchronous>, transform_indices = @transform_1, window_bounds = array<i64: 9, 128>}, {pipeline_mode = #tpu.pipeline_mode<synchronous>, transform_indices = @transform_2, window_bounds = array<i64: 1, 128>}, {pipeline_mode = #tpu.pipeline_mode<synchronous>, transform_indices = @transform_3, window_bounds = array<i64: 128, 128>}, {pipeline_mode = #tpu.pipeline_mode<synchronous>, transform_indices = @transform_4, window_bounds = array<i64: 1, 128>}, {pipeline_mode = #tpu.pipeline_mode<synchronous>, transform_indices = @transform_5, window_bounds = array<i64: 128, 128>}, {pipeline_mode = #tpu.pipeline_mode<synchronous>, transform_indices = @transform_6, window_bounds = array<i64: 1, 128>}, {transform_indices = @transform_7, window_bounds = array<i64: 1, 1, 128>}]} {
    %c0 = arith.constant 0 : index
    %c0_0 = arith.constant 0 : index
    %0 = vector.load %arg3[%c0, %c0_0] : memref<1x128xf32, #tpu.memory_space<vmem>>, vector<1x128xf32>
    %1 = vector.shape_cast %0 : vector<1x128xf32> to vector<1x128xf32>
    %2 = vector.broadcast %1 : vector<1x128xf32> to vector<72x128xf32>
    %c0_1 = arith.constant 0 : index
    %c0_2 = arith.constant 0 : index
    %c0_3 = arith.constant 0 : index
    %c0_4 = arith.constant 0 : index
    %3 = vector.load %arg1[%c0_1, %c0_2, %c0_3, %c0_4] : memref<1x4x88x1xf32, #tpu.memory_space<vmem>>, vector<1x1x72x1xf32>
    %4 = vector.shape_cast %3 : vector<1x1x72x1xf32> to vector<72x1xf32>
    %c0_5 = arith.constant 0 : index
    %c0_6 = arith.constant 0 : index
    %5 = vector.load %arg2[%c0_5, %c0_6] : memref<9x128xf32, #tpu.memory_space<vmem>>, vector<1x128xf32>
    %6 = vector.broadcast %4 : vector<72x1xf32> to vector<72x128xf32>
    %7 = vector.broadcast %5 : vector<1x128xf32> to vector<72x128xf32>
    %8 = arith.mulf %6, %7 : vector<72x128xf32>
    %9 = arith.addf %2, %8 : vector<72x128xf32>
    %c0_7 = arith.constant 0 : index
    %c1 = arith.constant 1 : index
    %c0_8 = arith.constant 0 : index
    %c0_9 = arith.constant 0 : index
    %10 = vector.load %arg1[%c0_7, %c1, %c0_8, %c0_9] : memref<1x4x88x1xf32, #tpu.memory_space<vmem>>, vector<1x1x72x1xf32>
    %11 = vector.shape_cast %10 : vector<1x1x72x1xf32> to vector<72x1xf32>
    %c1_10 = arith.constant 1 : index
    %c0_11 = arith.constant 0 : index
    %12 = vector.load %arg2[%c1_10, %c0_11] : memref<9x128xf32, #tpu.memory_space<vmem>>, vector<1x128xf32>
    %13 = vector.broadcast %11 : vector<72x1xf32> to vector<72x128xf32>
    %14 = vector.broadcast %12 : vector<1x128xf32> to vector<72x128xf32>
    %15 = arith.mulf %13, %14 : vector<72x128xf32>
    %16 = arith.addf %9, %15 : vector<72x128xf32>
    %c0_12 = arith.constant 0 : index
    %c0_13 = arith.constant 0 : index
    %c1_14 = arith.constant 1 : index
    %c0_15 = arith.constant 0 : index
    %17 = vector.load %arg1[%c0_12, %c0_13, %c1_14, %c0_15] : memref<1x4x88x1xf32, #tpu.memory_space<vmem>>, vector<1x1x72x1xf32>
    %18 = vector.shape_cast %17 : vector<1x1x72x1xf32> to vector<72x1xf32>
    %c2 = arith.constant 2 : index
    %c0_16 = arith.constant 0 : index
    %19 = vector.load %arg2[%c2, %c0_16] : memref<9x128xf32, #tpu.memory_space<vmem>>, vector<1x128xf32>
    %20 = vector.broadcast %18 : vector<72x1xf32> to vector<72x128xf32>
    %21 = vector.broadcast %19 : vector<1x128xf32> to vector<72x128xf32>
    %22 = arith.mulf %20, %21 : vector<72x128xf32>
    %23 = arith.addf %16, %22 : vector<72x128xf32>
    %c0_17 = arith.constant 0 : index
    %c2_18 = arith.constant 2 : index
    %c0_19 = arith.constant 0 : index
    %c0_20 = arith.constant 0 : index
    %24 = vector.load %arg1[%c0_17, %c2_18, %c0_19, %c0_20] : memref<1x4x88x1xf32, #tpu.memory_space<vmem>>, vector<1x1x72x1xf32>
    %25 = vector.shape_cast %24 : vector<1x1x72x1xf32> to vector<72x1xf32>
    %c3 = arith.constant 3 : index
    %c0_21 = arith.constant 0 : index
    %26 = vector.load %arg2[%c3, %c0_21] : memref<9x128xf32, #tpu.memory_space<vmem>>, vector<1x128xf32>
    %27 = vector.broadcast %25 : vector<72x1xf32> to vector<72x128xf32>
    %28 = vector.broadcast %26 : vector<1x128xf32> to vector<72x128xf32>
    %29 = arith.mulf %27, %28 : vector<72x128xf32>
    %30 = arith.addf %23, %29 : vector<72x128xf32>
    %c0_22 = arith.constant 0 : index
    %c3_23 = arith.constant 3 : index
    %c0_24 = arith.constant 0 : index
    %c0_25 = arith.constant 0 : index
    %31 = vector.load %arg1[%c0_22, %c3_23, %c0_24, %c0_25] : memref<1x4x88x1xf32, #tpu.memory_space<vmem>>, vector<1x1x72x1xf32>
    %32 = vector.shape_cast %31 : vector<1x1x72x1xf32> to vector<72x1xf32>
    %c4 = arith.constant 4 : index
    %c0_26 = arith.constant 0 : index
    %33 = vector.load %arg2[%c4, %c0_26] : memref<9x128xf32, #tpu.memory_space<vmem>>, vector<1x128xf32>
    %34 = vector.broadcast %32 : vector<72x1xf32> to vector<72x128xf32>
    %35 = vector.broadcast %33 : vector<1x128xf32> to vector<72x128xf32>
    %36 = arith.mulf %34, %35 : vector<72x128xf32>
    %37 = arith.addf %30, %36 : vector<72x128xf32>
    %c0_27 = arith.constant 0 : index
    %c2_28 = arith.constant 2 : index
    %c1_29 = arith.constant 1 : index
    %c0_30 = arith.constant 0 : index
    %38 = vector.load %arg1[%c0_27, %c2_28, %c1_29, %c0_30] : memref<1x4x88x1xf32, #tpu.memory_space<vmem>>, vector<1x1x72x1xf32>
    %39 = vector.shape_cast %38 : vector<1x1x72x1xf32> to vector<72x1xf32>
    %c5 = arith.constant 5 : index
    %c0_31 = arith.constant 0 : index
    %40 = vector.load %arg2[%c5, %c0_31] : memref<9x128xf32, #tpu.memory_space<vmem>>, vector<1x128xf32>
    %41 = vector.broadcast %39 : vector<72x1xf32> to vector<72x128xf32>
    %42 = vector.broadcast %40 : vector<1x128xf32> to vector<72x128xf32>
    %43 = arith.mulf %41, %42 : vector<72x128xf32>
    %44 = arith.addf %37, %43 : vector<72x128xf32>
    %c0_32 = arith.constant 0 : index
    %c0_33 = arith.constant 0 : index
    %c9 = arith.constant 9 : index
    %c0_34 = arith.constant 0 : index
    %45 = vector.load %arg1[%c0_32, %c0_33, %c9, %c0_34] : memref<1x4x88x1xf32, #tpu.memory_space<vmem>>, vector<1x1x72x1xf32>
    %46 = vector.shape_cast %45 : vector<1x1x72x1xf32> to vector<72x1xf32>
    %c6 = arith.constant 6 : index
    %c0_35 = arith.constant 0 : index
    %47 = vector.load %arg2[%c6, %c0_35] : memref<9x128xf32, #tpu.memory_space<vmem>>, vector<1x128xf32>
    %48 = vector.broadcast %46 : vector<72x1xf32> to vector<72x128xf32>
    %49 = vector.broadcast %47 : vector<1x128xf32> to vector<72x128xf32>
    %50 = arith.mulf %48, %49 : vector<72x128xf32>
    %51 = arith.addf %44, %50 : vector<72x128xf32>
    %c0_36 = arith.constant 0 : index
    %c1_37 = arith.constant 1 : index
    %c9_38 = arith.constant 9 : index
    %c0_39 = arith.constant 0 : index
    %52 = vector.load %arg1[%c0_36, %c1_37, %c9_38, %c0_39] : memref<1x4x88x1xf32, #tpu.memory_space<vmem>>, vector<1x1x72x1xf32>
    %53 = vector.shape_cast %52 : vector<1x1x72x1xf32> to vector<72x1xf32>
    %c7 = arith.constant 7 : index
    %c0_40 = arith.constant 0 : index
    %54 = vector.load %arg2[%c7, %c0_40] : memref<9x128xf32, #tpu.memory_space<vmem>>, vector<1x128xf32>
    %55 = vector.broadcast %53 : vector<72x1xf32> to vector<72x128xf32>
    %56 = vector.broadcast %54 : vector<1x128xf32> to vector<72x128xf32>
    %57 = arith.mulf %55, %56 : vector<72x128xf32>
    %58 = arith.addf %51, %57 : vector<72x128xf32>
    %c0_41 = arith.constant 0 : index
    %c0_42 = arith.constant 0 : index
    %c10 = arith.constant 10 : index
    %c0_43 = arith.constant 0 : index
    %59 = vector.load %arg1[%c0_41, %c0_42, %c10, %c0_43] : memref<1x4x88x1xf32, #tpu.memory_space<vmem>>, vector<1x1x72x1xf32>
    %60 = vector.shape_cast %59 : vector<1x1x72x1xf32> to vector<72x1xf32>
    %c8 = arith.constant 8 : index
    %c0_44 = arith.constant 0 : index
    %61 = vector.load %arg2[%c8, %c0_44] : memref<9x128xf32, #tpu.memory_space<vmem>>, vector<1x128xf32>
    %62 = vector.broadcast %60 : vector<72x1xf32> to vector<72x128xf32>
    %63 = vector.broadcast %61 : vector<1x128xf32> to vector<72x128xf32>
    %64 = arith.mulf %62, %63 : vector<72x128xf32>
    %65 = arith.addf %58, %64 : vector<72x128xf32>
    %66 = arith.truncf %65 : vector<72x128xf32> to vector<72x128xbf16>
    %67 = arith.negf %66 : vector<72x128xbf16>
    %68 = math.exp %67 : vector<72x128xbf16>
    %cst = arith.constant 1.000000e+00 : bf16
    %69 = vector.broadcast %cst : bf16 to vector<72x128xbf16>
    %70 = arith.addf %69, %68 : vector<72x128xbf16>
    %71 = arith.divf %69, %70 : vector<72x128xbf16>
    %72 = arith.mulf %66, %71 : vector<72x128xbf16>
    %c0_45 = arith.constant 0 : index
    %c0_46 = arith.constant 0 : index
    %73 = vector.load %arg4[%c0_45, %c0_46] : memref<128x128xbf16, #tpu.memory_space<vmem>>, vector<128x128xbf16>
    %cst_47 = arith.constant dense<0.000000e+00> : vector<72x128xf32>
    %74 = tpu.matmul %72, %73, %cst_47 {dimension_numbers = #tpu.dot_dimension_numbers<[1], [0], [0], [1], [0, 0, 1, 1], [], []>} : vector<72x128xbf16>, vector<128x128xbf16>, vector<72x128xf32> -> vector<72x128xf32>
    %c0_48 = arith.constant 0 : index
    %c0_49 = arith.constant 0 : index
    %75 = vector.load %arg5[%c0_48, %c0_49] : memref<1x128xf32, #tpu.memory_space<vmem>>, vector<1x128xf32>
    %76 = vector.broadcast %75 : vector<1x128xf32> to vector<72x128xf32>
    %77 = arith.addf %74, %76 : vector<72x128xf32>
    %78 = arith.truncf %77 : vector<72x128xf32> to vector<72x128xbf16>
    %79 = arith.negf %78 : vector<72x128xbf16>
    %80 = math.exp %79 : vector<72x128xbf16>
    %cst_50 = arith.constant 1.000000e+00 : bf16
    %81 = vector.broadcast %cst_50 : bf16 to vector<72x128xbf16>
    %82 = arith.addf %81, %80 : vector<72x128xbf16>
    %83 = arith.divf %81, %82 : vector<72x128xbf16>
    %84 = arith.mulf %78, %83 : vector<72x128xbf16>
    %85 = tpu.iota {dimensions = array<i32: 0>} : vector<72x1xi32>
    %c9_i32 = arith.constant 9 : i32
    %c0_i32 = arith.constant 0 : i32
    %86 = arith.cmpi eq, %c9_i32, %c0_i32 : i32
    %c1_i32 = arith.constant 1 : i32
    %87 = arith.select %86, %c1_i32, %c9_i32 : i32
    %88 = vector.broadcast %87 : i32 to vector<72x1xi32>
    %89 = arith.remsi %85, %88 : vector<72x1xi32>
    %c0_i32_51 = arith.constant 0 : i32
    %90 = vector.broadcast %c0_i32_51 : i32 to vector<72x1xi32>
    %91 = arith.cmpi ne, %89, %90 : vector<72x1xi32>
    %c0_i32_52 = arith.constant 0 : i32
    %92 = vector.broadcast %c0_i32_52 : i32 to vector<72x1xi32>
    %93 = arith.cmpi slt, %89, %92 : vector<72x1xi32>
    %c0_i32_53 = arith.constant 0 : i32
    %94 = arith.cmpi slt, %87, %c0_i32_53 : i32
    %95 = vector.broadcast %94 : i1 to vector<72x1xi1>
    %96 = vector.broadcast %95 : vector<72x1xi1> to vector<72x1xi1>
    %97 = arith.xori %93, %96 : vector<72x1xi1>
    %98 = arith.andi %97, %91 : vector<72x1xi1>
    %99 = vector.broadcast %87 : i32 to vector<72x1xi32>
    %100 = arith.addi %89, %99 : vector<72x1xi32>
    %101 = arith.select %98, %100, %89 : vector<72x1xi1>, vector<72x1xi32>
    %c8_i32 = arith.constant 8 : i32
    %102 = vector.broadcast %c8_i32 : i32 to vector<72x1xi32>
    %103 = arith.cmpi slt, %101, %102 : vector<72x1xi32>
    %104 = arith.extf %84 : vector<72x128xbf16> to vector<72x128xf32>
    %cst_54 = arith.constant 0xFF800000 : f32
    %105 = vector.shape_cast %103 : vector<72x1xi1> to vector<72x1xi1>
    %106 = vector.broadcast %105 : vector<72x1xi1> to vector<72x128xi1>
    %107 = vector.broadcast %cst_54 : f32 to vector<72x128xf32>
    %108 = arith.select %106, %104, %107 : vector<72x128xi1>, vector<72x128xf32>
    %cst_55 = arith.constant dense<0xFF800000> : vector<128xf32>
    %109 = vector.multi_reduction <maximumf>, %108, %cst_55 [0] : vector<72x128xf32> to vector<128xf32>
    %110 = vector.shape_cast %109 : vector<128xf32> to vector<1x128xf32>
    %111 = arith.truncf %110 : vector<1x128xf32> to vector<1x128xbf16>
    %c0_56 = arith.constant 0 : index
    %c0_57 = arith.constant 0 : index
    %112 = vector.load %arg6[%c0_56, %c0_57] : memref<128x128xbf16, #tpu.memory_space<vmem>>, vector<128x128xbf16>
    %cst_58 = arith.constant dense<0.000000e+00> : vector<1x128xf32>
    %113 = tpu.matmul %111, %112, %cst_58 {dimension_numbers = #tpu.dot_dimension_numbers<[1], [0], [0], [1], [0, 0, 1, 1], [], []>} : vector<1x128xbf16>, vector<128x128xbf16>, vector<1x128xf32> -> vector<1x128xf32>
    %c0_59 = arith.constant 0 : index
    %c0_60 = arith.constant 0 : index
    %114 = vector.load %arg7[%c0_59, %c0_60] : memref<1x128xf32, #tpu.memory_space<vmem>>, vector<1x128xf32>
    %115 = arith.addf %113, %114 : vector<1x128xf32>
    %c0_61 = arith.constant 0 : index
    %c0_62 = arith.constant 0 : index
    %c0_63 = arith.constant 0 : index
    %116 = vector.load %arg8[%c0_61, %c0_62, %c0_63] : memref<1x1x128xf32, #tpu.memory_space<vmem>>, vector<1x1x128xf32>
    %117 = vector.shape_cast %116 : vector<1x1x128xf32> to vector<1x128xf32>
    %118 = vector.shape_cast %115 : vector<1x128xf32> to vector<1x1x128xf32>
    tpu.vector_store %arg8[%c0_61, %c0_62, %c0_63], %118 {strides = array<i32>} : memref<1x1x128xf32, #tpu.memory_space<vmem>>, vector<1x1x128xf32>,
    return
  }
  func.func @transform_0(%arg0: i32) -> (i32, i32, i32, i32) {
    %c0_i32 = arith.constant 0 : i32
    %c0_i32_0 = arith.constant 0 : i32
    %c0_i32_1 = arith.constant 0 : i32
    %c0_i32_2 = arith.constant 0 : i32
    return %arg0, %c0_i32, %c0_i32_0, %c0_i32_1 : i32, i32, i32, i32
  }
  func.func @transform_1(%arg0: i32) -> (i32, i32) {
    %c0_i32 = arith.constant 0 : i32
    %c0_i32_0 = arith.constant 0 : i32
    %c0_i32_1 = arith.constant 0 : i32
    return %c0_i32, %c0_i32_0 : i32, i32
  }
  func.func @transform_2(%arg0: i32) -> (i32, i32) {
    %c0_i32 = arith.constant 0 : i32
    %c0_i32_0 = arith.constant 0 : i32
    %c0_i32_1 = arith.constant 0 : i32
    return %c0_i32, %c0_i32_0 : i32, i32
  }
  func.func @transform_3(%arg0: i32) -> (i32, i32) {
    %c0_i32 = arith.constant 0 : i32
    %c0_i32_0 = arith.constant 0 : i32
    %c0_i32_1 = arith.constant 0 : i32
    return %c0_i32, %c0_i32_0 : i32, i32
  }
  func.func @transform_4(%arg0: i32) -> (i32, i32) {
    %c0_i32 = arith.constant 0 : i32
    %c0_i32_0 = arith.constant 0 : i32
    %c0_i32_1 = arith.constant 0 : i32
    return %c0_i32, %c0_i32_0 : i32, i32
  }
  func.func @transform_5(%arg0: i32) -> (i32, i32) {
    %c0_i32 = arith.constant 0 : i32
    %c0_i32_0 = arith.constant 0 : i32
    %c0_i32_1 = arith.constant 0 : i32
    return %c0_i32, %c0_i32_0 : i32, i32
  }
  func.func @transform_6(%arg0: i32) -> (i32, i32) {
    %c0_i32 = arith.constant 0 : i32
    %c0_i32_0 = arith.constant 0 : i32
    %c0_i32_1 = arith.constant 0 : i32
    return %c0_i32, %c0_i32_0 : i32, i32
  }
  func.func @transform_7(%arg0: i32) -> (i32, i32, i32) {
    %c0_i32 = arith.constant 0 : i32
    %c0_i32_0 = arith.constant 0 : i32
    %c0_i32_1 = arith.constant 0 : i32
    return %arg0, %c0_i32, %c0_i32_0 : i32, i32, i32
  }
}

</mosaic_0001>

<llo_original>
// kernel: img_model_forward.1
$region0: #{img_model_forward.1}
  #allocation0 [shape = 'u32[]', space=smem, size = 0x4, offset = 0x4, fixed_abs, tag = 'smem constant byte address 0x4 - core index']
  #allocation1 [shape = 'u32[72,128]{1,0:T(1,128)}', space=vmem, size = 0x9000, scoped, tag = 'internal scratch']
  %s0 = inlined_call_operand.vmem [shape: f32[2,4,88,1], index: 0, kind: input, shape index: {}]
  %s1 = inlined_call_operand.vmem [shape: f32[9,128], index: 1, kind: input, shape index: {}]
  %s2 = inlined_call_operand.vmem [shape: f32[1,128], index: 2, kind: input, shape index: {}]
  %s3 = inlined_call_operand.vmem [shape: bf16[128,128], index: 3, kind: input, shape index: {}]
  %s4 = inlined_call_operand.vmem [shape: f32[1,128], index: 4, kind: input, shape index: {}]
  %s5 = inlined_call_operand.vmem [shape: bf16[128,128], index: 5, kind: input, shape index: {}]
  %s6 = inlined_call_operand.vmem [shape: f32[1,128], index: 6, kind: input, shape index: {}]
  %s7 = inlined_call_operand.hbm [shape: f32[2,1,128], index: 7, kind: output, shape index: {}]
  %s8 = sld [smem:[#allocation0]]
  $region61: #{img_model_forward.1} parent=0
    _
  %s10 = ssub.s32 1, %s8
  %s11 = scalar_select 0, %s10, %s8
  $region1: #{img_model_forward.1} parent=0
    #allocation2 [shape = 'u8[1024]{0}', space=vmem, size = 0x400, scoped, tag = 'output window, operand 0']
    #allocation3 [shape = 's32[2]{0}', space=sflag, size = 0x8, scoped, tag = 'scoped memory for img_model_forward.1']
    %12 = vsyncpa [#allocation3], 0
    %s13 = scalar_lea.sflag [#allocation3], 1
    %14 = vsyncpa %s13, 0
    loop: start=0, step=1, limit=4
    $region2: #{img_model_forward.1} parent=1 // loop_pre_header
      _
    $region3: #{img_model_forward.1} parent=1 // loop_header
      %s16 = sphi 0, %s20
      %p17 = scmp.ge.s32.totalorder %s16, 4
      %s26 = sphi 0, %s28
      %s29 = sphi 0, %s26
      %s30 = sphi 0, %s29
      %s46 = sphi 0, %s30
      %s50 = sphi 0, %s50
      %s52 = sphi 0, %s50
      %s53 = sphi 0, %s52
      %s67 = sphi 0, %s53
      %s71 = sphi 0, %s71
      %s73 = sphi 0, %s71
      %s74 = sphi 0, %s73
      %s88 = sphi 0, %s74
      %s92 = sphi 0, %s92
      %s94 = sphi 0, %s92
      %s95 = sphi 0, %s94
      %s109 = sphi 0, %s95
      %s113 = sphi 0, %s113
      %s115 = sphi 0, %s113
      %s116 = sphi 0, %s115
      %s130 = sphi 0, %s116
      %s134 = sphi 0, %s134
      %s136 = sphi 0, %s134
      %s137 = sphi 0, %s136
      %s151 = sphi 0, %s137
      %s155 = sphi 0, %s155
      %s157 = sphi 0, %s155
      %s158 = sphi 0, %s157
      %s172 = sphi 0, %s158
      %s178 = sphi 0, %s180
      %s181 = sphi 0, %s178
      %s182 = sphi 0, %s181
      %s198 = sphi 0, %s182
    $region4: #{img_model_forward.1} parent=1 // loop_header_branch
      %19 = sbr.rel (%p17) target = $region8
    $region5: #{img_model_forward.1} parent=1 // loop_body
      %s21 = ssub.s32 %s16, 1
      %s22 = ssub.s32 %s16, 2
      %s23 = sadd.s32 %s16, 1
      %s24 = ssub.s32 %s16, %s23
      %p25 = scmp.eq.s32.totalorder %s24, 0
      %s27 = sadd.s32 %s26, 1
      %s28 = scalar_select %p25, %s26, %s27
      %p31 = pneg %p25
      %p32 = scmp.eq.s32.totalorder %s16, 1
      %p33 = por %p31, %p32
      %p34 = scmp.ne.s32.totalorder %s26, %s29
      %p35 = scmp.eq.s32.totalorder %s16, 0
      %p36 = por %p34, %p35
      %p37 = scmp.ne.s32.totalorder %s26, %s29
      %p38 = scmp.eq.s32.totalorder %s21, 1
      %p39 = por %p37, %p38
      %p40 = scmp.ne.s32.totalorder %s29, %s30
      %p41 = scmp.eq.s32.totalorder %s21, 0
      %p42 = por %p40, %p41
      %p43 = scmp.ne.s32.totalorder %s29, %s30
      %p44 = scmp.eq.s32.totalorder %s22, 1
      %p45 = por %p43, %p44
      %p47 = scmp.ne.s32.totalorder %s30, %s46
      %p48 = scmp.eq.s32.totalorder %s22, 0
      %p49 = por %p47, %p48
      %s51 = sadd.s32 %s50, 1
      %p54 = scmp.eq.s32.totalorder %s16, 1
      %p55 = scmp.ne.s32.totalorder %s50, %s52
      %p56 = scmp.eq.s32.totalorder %s16, 0
      %p57 = por %p55, %p56
      %p58 = scmp.ne.s32.totalorder %s50, %s52
      %p59 = scmp.eq.s32.totalorder %s21, 1
      %p60 = por %p58, %p59
      %p61 = scmp.ne.s32.totalorder %s52, %s53
      %p62 = scmp.eq.s32.totalorder %s21, 0
      %p63 = por %p61, %p62
      %p64 = scmp.ne.s32.totalorder %s52, %s53
      %p65 = scmp.eq.s32.totalorder %s22, 1
      %p66 = por %p64, %p65
      %p68 = scmp.ne.s32.totalorder %s53, %s67
      %p69 = scmp.eq.s32.totalorder %s22, 0
      %p70 = por %p68, %p69
      %s72 = sadd.s32 %s71, 1
      %p75 = scmp.eq.s32.totalorder %s16, 1
      %p76 = scmp.ne.s32.totalorder %s71, %s73
      %p77 = scmp.eq.s32.totalorder %s16, 0
      %p78 = por %p76, %p77
      %p79 = scmp.ne.s32.totalorder %s71, %s73
      %p80 = scmp.eq.s32.totalorder %s21, 1
      %p81 = por %p79, %p80
      %p82 = scmp.ne.s32.totalorder %s73, %s74
      %p83 = scmp.eq.s32.totalorder %s21, 0
      %p84 = por %p82, %p83
      %p85 = scmp.ne.s32.totalorder %s73, %s74
      %p86 = scmp.eq.s32.totalorder %s22, 1
      %p87 = por %p85, %p86
      %p89 = scmp.ne.s32.totalorder %s74, %s88
      %p90 = scmp.eq.s32.totalorder %s22, 0
      %p91 = por %p89, %p90
      %s93 = sadd.s32 %s92, 1
      %p96 = scmp.eq.s32.totalorder %s16, 1
      %p97 = scmp.ne.s32.totalorder %s92, %s94
      %p98 = scmp.eq.s32.totalorder %s16, 0
      %p99 = por %p97, %p98
      %p100 = scmp.ne.s32.totalorder %s92, %s94
      %p101 = scmp.eq.s32.totalorder %s21, 1
      %p102 = por %p100, %p101
      %p103 = scmp.ne.s32.totalorder %s94, %s95
      %p104 = scmp.eq.s32.totalorder %s21, 0
      %p105 = por %p103, %p104
      %p106 = scmp.ne.s32.totalorder %s94, %s95
      %p107 = scmp.eq.s32.totalorder %s22, 1
      %p108 = por %p106, %p107
      %p110 = scmp.ne.s32.totalorder %s95, %s109
      %p111 = scmp.eq.s32.totalorder %s22, 0
      %p112 = por %p110, %p111
      %s114 = sadd.s32 %s113, 1
      %p117 = scmp.eq.s32.totalorder %s16, 1
      %p118 = scmp.ne.s32.totalorder %s113, %s115
      %p119 = scmp.eq.s32.totalorder %s16, 0
      %p120 = por %p118, %p119
      %p121 = scmp.ne.s32.totalorder %s113, %s115
      %p122 = scmp.eq.s32.totalorder %s21, 1
      %p123 = por %p121, %p122
      %p124 = scmp.ne.s32.totalorder %s115, %s116
      %p125 = scmp.eq.s32.totalorder %s21, 0
      %p126 = por %p124, %p125
      %p127 = scmp.ne.s32.totalorder %s115, %s116
      %p128 = scmp.eq.s32.totalorder %s22, 1
      %p129 = por %p127, %p128
      %p131 = scmp.ne.s32.totalorder %s116, %s130
      %p132 = scmp.eq.s32.totalorder %s22, 0
      %p133 = por %p131, %p132
      %s135 = sadd.s32 %s134, 1
      %p138 = scmp.eq.s32.totalorder %s16, 1
      %p139 = scmp.ne.s32.totalorder %s134, %s136
      %p140 = scmp.eq.s32.totalorder %s16, 0
      %p141 = por %p139, %p140
      %p142 = scmp.ne.s32.totalorder %s134, %s136
      %p143 = scmp.eq.s32.totalorder %s21, 1
      %p144 = por %p142, %p143
      %p145 = scmp.ne.s32.totalorder %s136, %s137
      %p146 = scmp.eq.s32.totalorder %s21, 0
      %p147 = por %p145, %p146
      %p148 = scmp.ne.s32.totalorder %s136, %s137
      %p149 = scmp.eq.s32.totalorder %s22, 1
      %p150 = por %p148, %p149
      %p152 = scmp.ne.s32.totalorder %s137, %s151
      %p153 = scmp.eq.s32.totalorder %s22, 0
      %p154 = por %p152, %p153
      %s156 = sadd.s32 %s155, 1
      %p159 = scmp.eq.s32.totalorder %s16, 1
      %p160 = scmp.ne.s32.totalorder %s155, %s157
      %p161 = scmp.eq.s32.totalorder %s16, 0
      %p162 = por %p160, %p161
      %p163 = scmp.ne.s32.totalorder %s155, %s157
      %p164 = scmp.eq.s32.totalorder %s21, 1
      %p165 = por %p163, %p164
      %p166 = scmp.ne.s32.totalorder %s157, %s158
      %p167 = scmp.eq.s32.totalorder %s21, 0
      %p168 = por %p166, %p167
      %p169 = scmp.ne.s32.totalorder %s157, %s158
      %p170 = scmp.eq.s32.totalorder %s22, 1
      %p171 = por %p169, %p170
      %p173 = scmp.ne.s32.totalorder %s158, %s172
      %p174 = scmp.eq.s32.totalorder %s22, 0
      %p175 = por %p173, %p174
      %s176 = ssub.s32 %s16, %s23
      %p177 = scmp.eq.s32.totalorder %s176, 0
      %s179 = sadd.s32 %s178, 1
      %s180 = scalar_select %p177, %s178, %s179
      %p183 = pneg %p177
      %p184 = scmp.eq.s32.totalorder %s16, 1
      %p185 = por %p183, %p184
      %p186 = scmp.ne.s32.totalorder %s178, %s181
      %p187 = scmp.eq.s32.totalorder %s16, 0
      %p188 = por %p186, %p187
      %p189 = scmp.ne.s32.totalorder %s178, %s181
      %p190 = scmp.eq.s32.totalorder %s21, 1
      %p191 = por %p189, %p190
      %p192 = scmp.ne.s32.totalorder %s181, %s182
      %p193 = scmp.eq.s32.totalorder %s21, 0
      %p194 = por %p192, %p193
      %p195 = scmp.ne.s32.totalorder %s181, %s182
      %p196 = scmp.eq.s32.totalorder %s22, 1
      %p197 = por %p195, %p196
      %p199 = scmp.ne.s32.totalorder %s182, %s198
      %p200 = scmp.eq.s32.totalorder %s22, 0
      %p201 = por %p199, %p200
      %p202 = scmp.le.s32.totalorder 1, %s16
      %p203 = scmp.lt.s32.totalorder %s16, 3
      %p204 = pnand %p202, %p203
      %p205 = pneg %p204
      // Predicated region
      $region9: #{img_model_forward.1} parent=5 // pred_check
        _
      $region10: #{img_model_forward.1} parent=5 // pred_check_branch
        %207 = sbr.rel (%p204) target = $region12
      $region11: #{img_model_forward.1} parent=5 // pred_region
        %s208 = ssub.s32 %s16, 1
        // Predicated region
        $region13: #{img_model_forward.1} parent=11 // pred_check
          %p209 = pneg %p63
        $region14: #{img_model_forward.1} parent=11 // pred_check_branch
          %211 = sbr.rel (%p209) target = $region16
        $region15: #{img_model_forward.1} parent=11 // pred_region
          _
        $region16: #{img_model_forward.1} parent=11 // pred_fallthru
          _
        // Predicated region
        $region17: #{img_model_forward.1} parent=11 // pred_check
          %p212 = pneg %p84
        $region18: #{img_model_forward.1} parent=11 // pred_check_branch
          %214 = sbr.rel (%p212) target = $region20
        $region19: #{img_model_forward.1} parent=11 // pred_region
          _
        $region20: #{img_model_forward.1} parent=11 // pred_fallthru
          _
        // Predicated region
        $region21: #{img_model_forward.1} parent=11 // pred_check
          %p215 = pneg %p105
        $region22: #{img_model_forward.1} parent=11 // pred_check_branch
          %217 = sbr.rel (%p215) target = $region24
        $region23: #{img_model_forward.1} parent=11 // pred_region
          _
        $region24: #{img_model_forward.1} parent=11 // pred_fallthru
          _
        // Predicated region
        $region25: #{img_model_forward.1} parent=11 // pred_check
          %p218 = pneg %p126
        $region26: #{img_model_forward.1} parent=11 // pred_check_branch
          %220 = sbr.rel (%p218) target = $region28
        $region27: #{img_model_forward.1} parent=11 // pred_region
          _
        $region28: #{img_model_forward.1} parent=11 // pred_fallthru
          _
        // Predicated region
        $region29: #{img_model_forward.1} parent=11 // pred_check
          %p221 = pneg %p147
        $region30: #{img_model_forward.1} parent=11 // pred_check_branch
          %223 = sbr.rel (%p221) target = $region32
        $region31: #{img_model_forward.1} parent=11 // pred_region
          _
        $region32: #{img_model_forward.1} parent=11 // pred_fallthru
          _
        // Predicated region
        $region33: #{img_model_forward.1} parent=11 // pred_check
          %p224 = pneg %p168
        $region34: #{img_model_forward.1} parent=11 // pred_check_branch
          %226 = sbr.rel (%p224) target = $region36
        $region35: #{img_model_forward.1} parent=11 // pred_region
          _
        $region36: #{img_model_forward.1} parent=11 // pred_fallthru
          _
      $region12: #{img_model_forward.1} parent=5 // pred_fallthru
        _
      %p227 = scmp.lt.s32.totalorder %s16, 2
      // Predicated region
      $region37: #{img_model_forward.1} parent=5 // pred_check
        %p228 = pneg %p227
      $region38: #{img_model_forward.1} parent=5 // pred_check_branch
        %230 = sbr.rel (%p228) target = $region40
      $region39: #{img_model_forward.1} parent=5 // pred_region
        // Predicated region
        $region41: #{img_model_forward.1} parent=39 // pred_check
          %p231 = pneg %p36
        $region42: #{img_model_forward.1} parent=39 // pred_check_branch
          %233 = sbr.rel (%p231) target = $region44
        $region43: #{img_model_forward.1} parent=39 // pred_region
          %p234 = scmp.lt.s32.totalorder %s16, 1
          %s235 = scalar_select %p234, %s16, 1
          %s236 = smul.addr %s235, 44
          %s237 = smul.addr %s236, 8
          %s238 = scalar_lea.vmem %s0, %s237
        $region44: #{img_model_forward.1} parent=39 // pred_fallthru
          _
      $region40: #{img_model_forward.1} parent=5 // pred_fallthru
        _
      %p239 = scmp.le.s32.totalorder 1, %s16
      %p240 = scmp.lt.s32.totalorder %s16, 3
      %p241 = pnand %p239, %p240
      %p242 = pneg %p241
      // Predicated region
      $region45: #{img_model_forward.1} parent=5 // pred_check
        _
      $region46: #{img_model_forward.1} parent=5 // pred_check_branch
        %244 = sbr.rel (%p241) target = $region48
      $region47: #{img_model_forward.1} parent=5 // pred_region
        %s245 = ssub.s32 %s16, 1
        %p246 = scmp.lt.s32.totalorder %s21, 1
        %s247 = scalar_select %p246, %s21, 1
        %s248 = smul.addr %s247, 44
        %s249 = smul.addr %s248, 8
        %s250 = scalar_lea.vmem %s0, %s249
        %p251 = pneg %p42
        %p252 = pneg %p39
        %p253 = pneg %p63
        %p254 = pneg %p60
        %p255 = pneg %p84
        %p256 = pneg %p81
        %p257 = pneg %p105
        %p258 = pneg %p102
        %p259 = pneg %p126
        %p260 = pneg %p123
        %p261 = pneg %p147
        %p262 = pneg %p144
        %p263 = pneg %p168
        %p264 = pneg %p165
        %p265 = pneg %p194
        %p266 = pneg %p191
        %s267 = sand.u32 %s181, 1
        %s268 = scalar_lea.sflag [#allocation3], %s267
        %s269 = sand.u32 %s181, 1
        %s270 = scalar_lea.vmem [#allocation2], %s269
        %p271 = scmp.lt.s32.totalorder %s21, 1
        %s272 = scalar_select %p271, %s21, 1
        %s273 = smul.addr %s272, 44
        %s274 = smul.addr %s273, 8
        %s275 = scalar_lea.vmem %s0, %s274
        %v277 = vld [vmem:[%s2] sm:$0x1]
        %v279 = vperm.slane %v277, 0
        %v281 = vld [vmem:[%s275] sm:$0xff]
        %v282 = vld [vmem:[%s275 + $0x8] sm:$0xff]
        %v283 = vld [vmem:[%s275 + $0x10] sm:$0xff]
        %v284 = vld [vmem:[%s275 + $0x18] sm:$0xff]
        %v285 = vld [vmem:[%s275 + $0x20] sm:$0xff]
        %v286 = vld [vmem:[%s275 + $0x28] sm:$0xff]
        %v287 = vld [vmem:[%s275 + $0x30] sm:$0xff]
        %v288 = vld [vmem:[%s275 + $0x38] sm:$0xff]
        %v289 = vld [vmem:[%s275 + $0x40] sm:$0xff]
        %v290 = vld [vmem:[%s1] sm:$0x1]
        %292 = vset.pattern.permute.xlu0 0
        %293 = vperm.xlu0 %292, %v281
        %v294 = vpop.permute.xlu0 %293
        %297 = vset.pattern.permute.xlu0 0
        %298 = vperm.xlu0 %297, %v282
        %v299 = vpop.permute.xlu0 %298
        %302 = vset.pattern.permute.xlu0 0
        %303 = vperm.xlu0 %302, %v283
        %v304 = vpop.permute.xlu0 %303
        %307 = vset.pattern.permute.xlu0 0
        %308 = vperm.xlu0 %307, %v284
        %v309 = vpop.permute.xlu0 %308
        %312 = vset.pattern.permute.xlu0 0
        %313 = vperm.xlu0 %312, %v285
        %v314 = vpop.permute.xlu0 %313
        %317 = vset.pattern.permute.xlu0 0
        %318 = vperm.xlu0 %317, %v286
        %v319 = vpop.permute.xlu0 %318
        %322 = vset.pattern.permute.xlu0 0
        %323 = vperm.xlu0 %322, %v287
        %v324 = vpop.permute.xlu0 %323
        %327 = vset.pattern.permute.xlu0 0
        %328 = vperm.xlu0 %327, %v288
        %v329 = vpop.permute.xlu0 %328
        %332 = vset.pattern.permute.xlu0 0
        %333 = vperm.xlu0 %332, %v289
        %v334 = vpop.permute.xlu0 %333
        %v336 = vperm.slane %v290, 0
        %v337 = vmul.f32 %v294, %v336
        %v338 = vmul.f32 %v299, %v336
        %v339 = vmul.f32 %v304, %v336
        %v340 = vmul.f32 %v309, %v336
        %v341 = vmul.f32 %v314, %v336
        %v342 = vmul.f32 %v319, %v336
        %v343 = vmul.f32 %v324, %v336
        %v344 = vmul.f32 %v329, %v336
        %v345 = vmul.f32 %v334, %v336
        %v346 = vadd.f32 %v279, %v337
        %v347 = vadd.f32 %v279, %v338
        %v348 = vadd.f32 %v279, %v339
        %v349 = vadd.f32 %v279, %v340
        %v350 = vadd.f32 %v279, %v341
        %v351 = vadd.f32 %v279, %v342
        %v352 = vadd.f32 %v279, %v343
        %v353 = vadd.f32 %v279, %v344
        %v354 = vadd.f32 %v279, %v345
        %s355 = scalar_lea.vmem %s275, 88
        %v356 = vld [vmem:[%s355] sm:$0xff]
        %v357 = vld [vmem:[%s355 + $0x8] sm:$0xff]
        %v358 = vld [vmem:[%s355 + $0x10] sm:$0xff]
        %v359 = vld [vmem:[%s355 + $0x18] sm:$0xff]
        %v360 = vld [vmem:[%s355 + $0x20] sm:$0xff]
        %v361 = vld [vmem:[%s355 + $0x28] sm:$0xff]
        %v362 = vld [vmem:[%s355 + $0x30] sm:$0xff]
        %v363 = vld [vmem:[%s355 + $0x38] sm:$0xff]
        %v364 = vld [vmem:[%s355 + $0x40] sm:$0xff]
        %v365 = vld [vmem:[%s1 + $0x1] sm:$0x1]
        %367 = vset.pattern.permute.xlu0 0
        %368 = vperm.xlu0 %367, %v356
        %v369 = vpop.permute.xlu0 %368
        %372 = vset.pattern.permute.xlu0 0
        %373 = vperm.xlu0 %372, %v357
        %v374 = vpop.permute.xlu0 %373
        %377 = vset.pattern.permute.xlu0 0
        %378 = vperm.xlu0 %377, %v358
        %v379 = vpop.permute.xlu0 %378
        %382 = vset.pattern.permute.xlu0 0
        %383 = vperm.xlu0 %382, %v359
        %v384 = vpop.permute.xlu0 %383
        %387 = vset.pattern.permute.xlu0 0
        %388 = vperm.xlu0 %387, %v360
        %v389 = vpop.permute.xlu0 %388
        %392 = vset.pattern.permute.xlu0 0
        %393 = vperm.xlu0 %392, %v361
        %v394 = vpop.permute.xlu0 %393
        %397 = vset.pattern.permute.xlu0 0
        %398 = vperm.xlu0 %397, %v362
        %v399 = vpop.permute.xlu0 %398
        %402 = vset.pattern.permute.xlu0 0
        %403 = vperm.xlu0 %402, %v363
        %v404 = vpop.permute.xlu0 %403
        %407 = vset.pattern.permute.xlu0 0
        %408 = vperm.xlu0 %407, %v364
        %v409 = vpop.permute.xlu0 %408
        %v411 = vperm.slane %v365, 0
        %v412 = vmul.f32 %v369, %v411
        %v413 = vmul.f32 %v374, %v411
        %v414 = vmul.f32 %v379, %v411
        %v415 = vmul.f32 %v384, %v411
        %v416 = vmul.f32 %v389, %v411
        %v417 = vmul.f32 %v394, %v411
        %v418 = vmul.f32 %v399, %v411
        %v419 = vmul.f32 %v404, %v411
        %v420 = vmul.f32 %v409, %v411
        %v421 = vadd.f32 %v346, %v412
        %v422 = vadd.f32 %v347, %v413
        %v423 = vadd.f32 %v348, %v414
        %v424 = vadd.f32 %v349, %v415
        %v425 = vadd.f32 %v350, %v416
        %v426 = vadd.f32 %v351, %v417
        %v427 = vadd.f32 %v352, %v418
        %v428 = vadd.f32 %v353, %v419
        %v429 = vadd.f32 %v354, %v420
        %v430 = vld [vmem:[%s275 + $0x1] sm:$0xff]
        %v431 = vld [vmem:[%s275 + $0x9] sm:$0xff]
        %v432 = vld [vmem:[%s275 + $0x11] sm:$0xff]
        %v433 = vld [vmem:[%s275 + $0x19] sm:$0xff]
        %v434 = vld [vmem:[%s275 + $0x21] sm:$0xff]
        %v435 = vld [vmem:[%s275 + $0x29] sm:$0xff]
        %v436 = vld [vmem:[%s275 + $0x31] sm:$0xff]
        %v437 = vld [vmem:[%s275 + $0x39] sm:$0xff]
        %v438 = vld [vmem:[%s275 + $0x41] sm:$0xff]
        %v439 = vld [vmem:[%s1 + $0x2] sm:$0x1]
        %441 = vset.pattern.permute.xlu0 0
        %442 = vperm.xlu0 %441, %v430
        %v443 = vpop.permute.xlu0 %442
        %446 = vset.pattern.permute.xlu0 0
        %447 = vperm.xlu0 %446, %v431
        %v448 = vpop.permute.xlu0 %447
        %451 = vset.pattern.permute.xlu0 0
        %452 = vperm.xlu0 %451, %v432
        %v453 = vpop.permute.xlu0 %452
        %456 = vset.pattern.permute.xlu0 0
        %457 = vperm.xlu0 %456, %v433
        %v458 = vpop.permute.xlu0 %457
        %461 = vset.pattern.permute.xlu0 0
        %462 = vperm.xlu0 %461, %v434
        %v463 = vpop.permute.xlu0 %462
        %466 = vset.pattern.permute.xlu0 0
        %467 = vperm.xlu0 %466, %v435
        %v468 = vpop.permute.xlu0 %467
        %471 = vset.pattern.permute.xlu0 0
        %472 = vperm.xlu0 %471, %v436
        %v473 = vpop.permute.xlu0 %472
        %476 = vset.pattern.permute.xlu0 0
        %477 = vperm.xlu0 %476, %v437
        %v478 = vpop.permute.xlu0 %477
        %481 = vset.pattern.permute.xlu0 0
        %482 = vperm.xlu0 %481, %v438
        %v483 = vpop.permute.xlu0 %482
        %v485 = vperm.slane %v439, 0
        %v486 = vmul.f32 %v443, %v485
        %v487 = vmul.f32 %v448, %v485
        %v488 = vmul.f32 %v453, %v485
        %v489 = vmul.f32 %v458, %v485
        %v490 = vmul.f32 %v463, %v485
        %v491 = vmul.f32 %v468, %v485
        %v492 = vmul.f32 %v473, %v485
        %v493 = vmul.f32 %v478, %v485
        %v494 = vmul.f32 %v483, %v485
        %v495 = vadd.f32 %v421, %v486
        %v496 = vadd.f32 %v422, %v487
        %v497 = vadd.f32 %v423, %v488
        %v498 = vadd.f32 %v424, %v489
        %v499 = vadd.f32 %v425, %v490
        %v500 = vadd.f32 %v426, %v491
        %v501 = vadd.f32 %v427, %v492
        %v502 = vadd.f32 %v428, %v493
        %v503 = vadd.f32 %v429, %v494
        %s504 = scalar_lea.vmem %s275, 176
        %v505 = vld [vmem:[%s504] sm:$0xff]
        %v506 = vld [vmem:[%s504 + $0x8] sm:$0xff]
        %v507 = vld [vmem:[%s504 + $0x10] sm:$0xff]
        %v508 = vld [vmem:[%s504 + $0x18] sm:$0xff]
        %v509 = vld [vmem:[%s504 + $0x20] sm:$0xff]
        %v510 = vld [vmem:[%s504 + $0x28] sm:$0xff]
        %v511 = vld [vmem:[%s504 + $0x30] sm:$0xff]
        %v512 = vld [vmem:[%s504 + $0x38] sm:$0xff]
        %v513 = vld [vmem:[%s504 + $0x40] sm:$0xff]
        %v514 = vld [vmem:[%s1 + $0x3] sm:$0x1]
        %516 = vset.pattern.permute.xlu0 0
        %517 = vperm.xlu0 %516, %v505
        %v518 = vpop.permute.xlu0 %517
        %521 = vset.pattern.permute.xlu0 0
        %522 = vperm.xlu0 %521, %v506
        %v523 = vpop.permute.xlu0 %522
        %526 = vset.pattern.permute.xlu0 0
        %527 = vperm.xlu0 %526, %v507
        %v528 = vpop.permute.xlu0 %527
        %531 = vset.pattern.permute.xlu0 0
        %532 = vperm.xlu0 %531, %v508
        %v533 = vpop.permute.xlu0 %532
        %536 = vset.pattern.permute.xlu0 0
        %537 = vperm.xlu0 %536, %v509
        %v538 = vpop.permute.xlu0 %537
        %541 = vset.pattern.permute.xlu0 0
        %542 = vperm.xlu0 %541, %v510
        %v543 = vpop.permute.xlu0 %542
        %546 = vset.pattern.permute.xlu0 0
        %547 = vperm.xlu0 %546, %v511
        %v548 = vpop.permute.xlu0 %547
        %551 = vset.pattern.permute.xlu0 0
        %552 = vperm.xlu0 %551, %v512
        %v553 = vpop.permute.xlu0 %552
        %556 = vset.pattern.permute.xlu0 0
        %557 = vperm.xlu0 %556, %v513
        %v558 = vpop.permute.xlu0 %557
        %v560 = vperm.slane %v514, 0
        %v561 = vmul.f32 %v518, %v560
        %v562 = vmul.f32 %v523, %v560
        %v563 = vmul.f32 %v528, %v560
        %v564 = vmul.f32 %v533, %v560
        %v565 = vmul.f32 %v538, %v560
        %v566 = vmul.f32 %v543, %v560
        %v567 = vmul.f32 %v548, %v560
        %v568 = vmul.f32 %v553, %v560
        %v569 = vmul.f32 %v558, %v560
        %v570 = vadd.f32 %v495, %v561
        %v571 = vadd.f32 %v496, %v562
        %v572 = vadd.f32 %v497, %v563
        %v573 = vadd.f32 %v498, %v564
        %v574 = vadd.f32 %v499, %v565
        %v575 = vadd.f32 %v500, %v566
        %v576 = vadd.f32 %v501, %v567
        %v577 = vadd.f32 %v502, %v568
        %v578 = vadd.f32 %v503, %v569
        %s579 = scalar_lea.vmem %s275, 264
        %v580 = vld [vmem:[%s579] sm:$0xff]
        %v581 = vld [vmem:[%s579 + $0x8] sm:$0xff]
        %v582 = vld [vmem:[%s579 + $0x10] sm:$0xff]
        %v583 = vld [vmem:[%s579 + $0x18] sm:$0xff]
        %v584 = vld [vmem:[%s579 + $0x20] sm:$0xff]
        %v585 = vld [vmem:[%s579 + $0x28] sm:$0xff]
        %v586 = vld [vmem:[%s579 + $0x30] sm:$0xff]
        %v587 = vld [vmem:[%s579 + $0x38] sm:$0xff]
        %v588 = vld [vmem:[%s579 + $0x40] sm:$0xff]
        %v589 = vld [vmem:[%s1 + $0x4] sm:$0x1]
        %591 = vset.pattern.permute.xlu0 0
        %592 = vperm.xlu0 %591, %v580
        %v593 = vpop.permute.xlu0 %592
        %596 = vset.pattern.permute.xlu0 0
        %597 = vperm.xlu0 %596, %v581
        %v598 = vpop.permute.xlu0 %597
        %601 = vset.pattern.permute.xlu0 0
        %602 = vperm.xlu0 %601, %v582
        %v603 = vpop.permute.xlu0 %602
        %606 = vset.pattern.permute.xlu0 0
        %607 = vperm.xlu0 %606, %v583
        %v608 = vpop.permute.xlu0 %607
        %611 = vset.pattern.permute.xlu0 0
        %612 = vperm.xlu0 %611, %v584
        %v613 = vpop.permute.xlu0 %612
        %616 = vset.pattern.permute.xlu0 0
        %617 = vperm.xlu0 %616, %v585
        %v618 = vpop.permute.xlu0 %617
        %621 = vset.pattern.permute.xlu0 0
        %622 = vperm.xlu0 %621, %v586
        %v623 = vpop.permute.xlu0 %622
        %626 = vset.pattern.permute.xlu0 0
        %627 = vperm.xlu0 %626, %v587
        %v628 = vpop.permute.xlu0 %627
        %631 = vset.pattern.permute.xlu0 0
        %632 = vperm.xlu0 %631, %v588
        %v633 = vpop.permute.xlu0 %632
        %v635 = vperm.slane %v589, 0
        %v636 = vmul.f32 %v593, %v635
        %v637 = vmul.f32 %v598, %v635
        %v638 = vmul.f32 %v603, %v635
        %v639 = vmul.f32 %v608, %v635
        %v640 = vmul.f32 %v613, %v635
        %v641 = vmul.f32 %v618, %v635
        %v642 = vmul.f32 %v623, %v635
        %v643 = vmul.f32 %v628, %v635
        %v644 = vmul.f32 %v633, %v635
        %v645 = vadd.f32 %v570, %v636
        %v646 = vadd.f32 %v571, %v637
        %v647 = vadd.f32 %v572, %v638
        %v648 = vadd.f32 %v573, %v639
        %v649 = vadd.f32 %v574, %v640
        %v650 = vadd.f32 %v575, %v641
        %v651 = vadd.f32 %v576, %v642
        %v652 = vadd.f32 %v577, %v643
        %v653 = vadd.f32 %v578, %v644
        %v654 = vld [vmem:[%s504 + $0x1] sm:$0xff]
        %v655 = vld [vmem:[%s504 + $0x9] sm:$0xff]
        %v656 = vld [vmem:[%s504 + $0x11] sm:$0xff]
        %v657 = vld [vmem:[%s504 + $0x19] sm:$0xff]
        %v658 = vld [vmem:[%s504 + $0x21] sm:$0xff]
        %v659 = vld [vmem:[%s504 + $0x29] sm:$0xff]
        %v660 = vld [vmem:[%s504 + $0x31] sm:$0xff]
        %v661 = vld [vmem:[%s504 + $0x39] sm:$0xff]
        %v662 = vld [vmem:[%s504 + $0x41] sm:$0xff]
        %v663 = vld [vmem:[%s1 + $0x5] sm:$0x1]
        %665 = vset.pattern.permute.xlu0 0
        %666 = vperm.xlu0 %665, %v654
        %v667 = vpop.permute.xlu0 %666
        %670 = vset.pattern.permute.xlu0 0
        %671 = vperm.xlu0 %670, %v655
        %v672 = vpop.permute.xlu0 %671
        %675 = vset.pattern.permute.xlu0 0
        %676 = vperm.xlu0 %675, %v656
        %v677 = vpop.permute.xlu0 %676
        %680 = vset.pattern.permute.xlu0 0
        %681 = vperm.xlu0 %680, %v657
        %v682 = vpop.permute.xlu0 %681
        %685 = vset.pattern.permute.xlu0 0
        %686 = vperm.xlu0 %685, %v658
        %v687 = vpop.permute.xlu0 %686
        %690 = vset.pattern.permute.xlu0 0
        %691 = vperm.xlu0 %690, %v659
        %v692 = vpop.permute.xlu0 %691
        %695 = vset.pattern.permute.xlu0 0
        %696 = vperm.xlu0 %695, %v660
        %v697 = vpop.permute.xlu0 %696
        %700 = vset.pattern.permute.xlu0 0
        %701 = vperm.xlu0 %700, %v661
        %v702 = vpop.permute.xlu0 %701
        %705 = vset.pattern.permute.xlu0 0
        %706 = vperm.xlu0 %705, %v662
        %v707 = vpop.permute.xlu0 %706
        %v709 = vperm.slane %v663, 0
        %v710 = vmul.f32 %v667, %v709
        %v711 = vmul.f32 %v672, %v709
        %v712 = vmul.f32 %v677, %v709
        %v713 = vmul.f32 %v682, %v709
        %v714 = vmul.f32 %v687, %v709
        %v715 = vmul.f32 %v692, %v709
        %v716 = vmul.f32 %v697, %v709
        %v717 = vmul.f32 %v702, %v709
        %v718 = vmul.f32 %v707, %v709
        %v719 = vadd.f32 %v645, %v710
        %v720 = vadd.f32 %v646, %v711
        %v721 = vadd.f32 %v647, %v712
        %v722 = vadd.f32 %v648, %v713
        %v723 = vadd.f32 %v649, %v714
        %v724 = vadd.f32 %v650, %v715
        %v725 = vadd.f32 %v651, %v716
        %v726 = vadd.f32 %v652, %v717
        %v727 = vadd.f32 %v653, %v718
        %v728 = vld [vmem:[%s275 + $0x9] sm:$0xff]
        %v729 = vld [vmem:[%s275 + $0x11] sm:$0xff]
        %v730 = vld [vmem:[%s275 + $0x19] sm:$0xff]
        %v731 = vld [vmem:[%s275 + $0x21] sm:$0xff]
        %v732 = vld [vmem:[%s275 + $0x29] sm:$0xff]
        %v733 = vld [vmem:[%s275 + $0x31] sm:$0xff]
        %v734 = vld [vmem:[%s275 + $0x39] sm:$0xff]
        %v735 = vld [vmem:[%s275 + $0x41] sm:$0xff]
        %v736 = vld [vmem:[%s275 + $0x49] sm:$0xff]
        %v737 = vld [vmem:[%s1 + $0x6] sm:$0x1]
        %739 = vset.pattern.permute.xlu0 0
        %740 = vperm.xlu0 %739, %v728
        %v741 = vpop.permute.xlu0 %740
        %744 = vset.pattern.permute.xlu0 0
        %745 = vperm.xlu0 %744, %v729
        %v746 = vpop.permute.xlu0 %745
        %749 = vset.pattern.permute.xlu0 0
        %750 = vperm.xlu0 %749, %v730
        %v751 = vpop.permute.xlu0 %750
        %754 = vset.pattern.permute.xlu0 0
        %755 = vperm.xlu0 %754, %v731
        %v756 = vpop.permute.xlu0 %755
        %759 = vset.pattern.permute.xlu0 0
        %760 = vperm.xlu0 %759, %v732
        %v761 = vpop.permute.xlu0 %760
        %764 = vset.pattern.permute.xlu0 0
        %765 = vperm.xlu0 %764, %v733
        %v766 = vpop.permute.xlu0 %765
        %769 = vset.pattern.permute.xlu0 0
        %770 = vperm.xlu0 %769, %v734
        %v771 = vpop.permute.xlu0 %770
        %774 = vset.pattern.permute.xlu0 0
        %775 = vperm.xlu0 %774, %v735
        %v776 = vpop.permute.xlu0 %775
        %779 = vset.pattern.permute.xlu0 0
        %780 = vperm.xlu0 %779, %v736
        %v781 = vpop.permute.xlu0 %780
        %v783 = vperm.slane %v737, 0
        %v784 = vmul.f32 %v741, %v783
        %v785 = vmul.f32 %v746, %v783
        %v786 = vmul.f32 %v751, %v783
        %v787 = vmul.f32 %v756, %v783
        %v788 = vmul.f32 %v761, %v783
        %v789 = vmul.f32 %v766, %v783
        %v790 = vmul.f32 %v771, %v783
        %v791 = vmul.f32 %v776, %v783
        %v792 = vmul.f32 %v781, %v783
        %v793 = vadd.f32 %v719, %v784
        %v794 = vadd.f32 %v720, %v785
        %v795 = vadd.f32 %v721, %v786
        %v796 = vadd.f32 %v722, %v787
        %v797 = vadd.f32 %v723, %v788
        %v798 = vadd.f32 %v724, %v789
        %v799 = vadd.f32 %v725, %v790
        %v800 = vadd.f32 %v726, %v791
        %v801 = vadd.f32 %v727, %v792
        %v802 = vld [vmem:[%s355 + $0x9] sm:$0xff]
        %v803 = vld [vmem:[%s355 + $0x11] sm:$0xff]
        %v804 = vld [vmem:[%s355 + $0x19] sm:$0xff]
        %v805 = vld [vmem:[%s355 + $0x21] sm:$0xff]
        %v806 = vld [vmem:[%s355 + $0x29] sm:$0xff]
        %v807 = vld [vmem:[%s355 + $0x31] sm:$0xff]
        %v808 = vld [vmem:[%s355 + $0x39] sm:$0xff]
        %v809 = vld [vmem:[%s355 + $0x41] sm:$0xff]
        %v810 = vld [vmem:[%s355 + $0x49] sm:$0xff]
        %v811 = vld [vmem:[%s1 + $0x7] sm:$0x1]
        %813 = vset.pattern.permute.xlu0 0
        %814 = vperm.xlu0 %813, %v802
        %v815 = vpop.permute.xlu0 %814
        %818 = vset.pattern.permute.xlu0 0
        %819 = vperm.xlu0 %818, %v803
        %v820 = vpop.permute.xlu0 %819
        %823 = vset.pattern.permute.xlu0 0
        %824 = vperm.xlu0 %823, %v804
        %v825 = vpop.permute.xlu0 %824
        %828 = vset.pattern.permute.xlu0 0
        %829 = vperm.xlu0 %828, %v805
        %v830 = vpop.permute.xlu0 %829
        %833 = vset.pattern.permute.xlu0 0
        %834 = vperm.xlu0 %833, %v806
        %v835 = vpop.permute.xlu0 %834
        %838 = vset.pattern.permute.xlu0 0
        %839 = vperm.xlu0 %838, %v807
        %v840 = vpop.permute.xlu0 %839
        %843 = vset.pattern.permute.xlu0 0
        %844 = vperm.xlu0 %843, %v808
        %v845 = vpop.permute.xlu0 %844
        %848 = vset.pattern.permute.xlu0 0
        %849 = vperm.xlu0 %848, %v809
        %v850 = vpop.permute.xlu0 %849
        %853 = vset.pattern.permute.xlu0 0
        %854 = vperm.xlu0 %853, %v810
        %v855 = vpop.permute.xlu0 %854
        %v857 = vperm.slane %v811, 0
        %v858 = vmul.f32 %v815, %v857
        %v859 = vmul.f32 %v820, %v857
        %v860 = vmul.f32 %v825, %v857
        %v861 = vmul.f32 %v830, %v857
        %v862 = vmul.f32 %v835, %v857
        %v863 = vmul.f32 %v840, %v857
        %v864 = vmul.f32 %v845, %v857
        %v865 = vmul.f32 %v850, %v857
        %v866 = vmul.f32 %v855, %v857
        %v867 = vadd.f32 %v793, %v858
        %v868 = vadd.f32 %v794, %v859
        %v869 = vadd.f32 %v795, %v860
        %v870 = vadd.f32 %v796, %v861
        %v871 = vadd.f32 %v797, %v862
        %v872 = vadd.f32 %v798, %v863
        %v873 = vadd.f32 %v799, %v864
        %v874 = vadd.f32 %v800, %v865
        %v875 = vadd.f32 %v801, %v866
        %v876 = vld [vmem:[%s275 + $0xa] sm:$0xff]
        %v877 = vld [vmem:[%s275 + $0x12] sm:$0xff]
        %v878 = vld [vmem:[%s275 + $0x1a] sm:$0xff]
        %v879 = vld [vmem:[%s275 + $0x22] sm:$0xff]
        %v880 = vld [vmem:[%s275 + $0x2a] sm:$0xff]
        %v881 = vld [vmem:[%s275 + $0x32] sm:$0xff]
        %v882 = vld [vmem:[%s275 + $0x3a] sm:$0xff]
        %v883 = vld [vmem:[%s275 + $0x42] sm:$0xff]
        %v884 = vld [vmem:[%s275 + $0x4a] sm:$0xff]
        %v885 = vld [vmem:[%s1 + $0x8] sm:$0x1]
        %887 = vset.pattern.permute.xlu0 0
        %888 = vperm.xlu0 %887, %v876
        %v889 = vpop.permute.xlu0 %888
        %892 = vset.pattern.permute.xlu0 0
        %893 = vperm.xlu0 %892, %v877
        %v894 = vpop.permute.xlu0 %893
        %897 = vset.pattern.permute.xlu0 0
        %898 = vperm.xlu0 %897, %v878
        %v899 = vpop.permute.xlu0 %898
        %902 = vset.pattern.permute.xlu0 0
        %903 = vperm.xlu0 %902, %v879
        %v904 = vpop.permute.xlu0 %903
        %907 = vset.pattern.permute.xlu0 0
        %908 = vperm.xlu0 %907, %v880
        %v909 = vpop.permute.xlu0 %908
        %912 = vset.pattern.permute.xlu0 0
        %913 = vperm.xlu0 %912, %v881
        %v914 = vpop.permute.xlu0 %913
        %917 = vset.pattern.permute.xlu0 0
        %918 = vperm.xlu0 %917, %v882
        %v919 = vpop.permute.xlu0 %918
        %922 = vset.pattern.permute.xlu0 0
        %923 = vperm.xlu0 %922, %v883
        %v924 = vpop.permute.xlu0 %923
        %927 = vset.pattern.permute.xlu0 0
        %928 = vperm.xlu0 %927, %v884
        %v929 = vpop.permute.xlu0 %928
        %v931 = vperm.slane %v885, 0
        %v932 = vmul.f32 %v889, %v931
        %v933 = vmul.f32 %v894, %v931
        %v934 = vmul.f32 %v899, %v931
        %v935 = vmul.f32 %v904, %v931
        %v936 = vmul.f32 %v909, %v931
        %v937 = vmul.f32 %v914, %v931
        %v938 = vmul.f32 %v919, %v931
        %v939 = vmul.f32 %v924, %v931
        %v940 = vmul.f32 %v929, %v931
        %v941 = vadd.f32 %v867, %v932
        %v942 = vadd.f32 %v868, %v933
        %v943 = vadd.f32 %v869, %v934
        %v944 = vadd.f32 %v870, %v935
        %v945 = vadd.f32 %v871, %v936
        %v946 = vadd.f32 %v872, %v937
        %v947 = vadd.f32 %v873, %v938
        %v948 = vadd.f32 %v874, %v939
        %v949 = vadd.f32 %v875, %v940
        %v950 = vpack.c.bf16 %v941, %v941
        %v951 = vpack.c.bf16 %v942, %v942
        %v952 = vpack.c.bf16 %v943, %v943
        %v953 = vpack.c.bf16 %v944, %v944
        %v954 = vpack.c.bf16 %v945, %v945
        %v955 = vpack.c.bf16 %v946, %v946
        %v956 = vpack.c.bf16 %v947, %v947
        %v957 = vpack.c.bf16 %v948, %v948
        %v958 = vpack.c.bf16 %v949, %v949
        %v959 = vxor.u32 %v950, 2147516416
        %v960 = vxor.u32 %v951, 2147516416
        %v961 = vxor.u32 %v952, 2147516416
        %v962 = vxor.u32 %v953, 2147516416
        %v963 = vxor.u32 %v954, 2147516416
        %v964 = vxor.u32 %v955, 2147516416
        %v965 = vxor.u32 %v956, 2147516416
        %v966 = vxor.u32 %v957, 2147516416
        %v967 = vxor.u32 %v958, 2147516416
        %v968 = vunpack.c.l.bf16 %v959
        %v969 = vunpack.c.l.bf16 %v960
        %v970 = vunpack.c.l.bf16 %v961
        %v971 = vunpack.c.l.bf16 %v962
        %v972 = vunpack.c.l.bf16 %v963
        %v973 = vunpack.c.l.bf16 %v964
        %v974 = vunpack.c.l.bf16 %v965
        %v975 = vunpack.c.l.bf16 %v966
        %v976 = vunpack.c.l.bf16 %v967
        %v977 = vmul.f32 %v968, 1.442695
        %v978 = vpow.pop %v977
        %v979 = vmul.f32 %v969, 1.442695
        %v980 = vpow.pop %v979
        %v981 = vmul.f32 %v970, 1.442695
        %v982 = vpow.pop %v981
        %v983 = vmul.f32 %v971, 1.442695
        %v984 = vpow.pop %v983
        %v985 = vmul.f32 %v972, 1.442695
        %v986 = vpow.pop %v985
        %v987 = vmul.f32 %v973, 1.442695
        %v988 = vpow.pop %v987
        %v989 = vmul.f32 %v974, 1.442695
        %v990 = vpow.pop %v989
        %v991 = vmul.f32 %v975, 1.442695
        %v992 = vpow.pop %v991
        %v993 = vmul.f32 %v976, 1.442695
        %v994 = vpow.pop %v993
        %v995 = vpack.c.bf16 %v978, %v978
        %v996 = vpack.c.bf16 %v980, %v980
        %v997 = vpack.c.bf16 %v982, %v982
        %v998 = vpack.c.bf16 %v984, %v984
        %v999 = vpack.c.bf16 %v986, %v986
        %v1000 = vpack.c.bf16 %v988, %v988
        %v1001 = vpack.c.bf16 %v990, %v990
        %v1002 = vpack.c.bf16 %v992, %v992
        %v1003 = vpack.c.bf16 %v994, %v994
        %v1004 = vunpack.c.l.bf16 %v995
        %v1005 = vunpack.c.l.bf16 %v996
        %v1006 = vunpack.c.l.bf16 %v997
        %v1007 = vunpack.c.l.bf16 %v998
        %v1008 = vunpack.c.l.bf16 %v999
        %v1009 = vunpack.c.l.bf16 %v1000
        %v1010 = vunpack.c.l.bf16 %v1001
        %v1011 = vunpack.c.l.bf16 %v1002
        %v1012 = vunpack.c.l.bf16 %v1003
        %v1013 = vadd.f32 %v1004, 1.0
        %v1014 = vadd.f32 %v1005, 1.0
        %v1015 = vadd.f32 %v1006, 1.0
        %v1016 = vadd.f32 %v1007, 1.0
        %v1017 = vadd.f32 %v1008, 1.0
        %v1018 = vadd.f32 %v1009, 1.0
        %v1019 = vadd.f32 %v1010, 1.0
        %v1020 = vadd.f32 %v1011, 1.0
        %v1021 = vadd.f32 %v1012, 1.0
        %v1022 = vpack.c.bf16 %v1013, %v1013
        %v1023 = vpack.c.bf16 %v1014, %v1014
        %v1024 = vpack.c.bf16 %v1015, %v1015
        %v1025 = vpack.c.bf16 %v1016, %v1016
        %v1026 = vpack.c.bf16 %v1017, %v1017
        %v1027 = vpack.c.bf16 %v1018, %v1018
        %v1028 = vpack.c.bf16 %v1019, %v1019
        %v1029 = vpack.c.bf16 %v1020, %v1020
        %v1030 = vpack.c.bf16 %v1021, %v1021
        %v1031 = vunpack.c.h.bf16 1065369472
        %v1032 = vunpack.c.l.bf16 1065369472
        %v1033 = vunpack.c.h.bf16 %v1022
        %v1034 = vunpack.c.l.bf16 %v1022
        %v1035 = vrcp.pop %v1033
        %v1036 = vmul.f32 %v1031, %v1035
        %v1037 = vrcp.pop %v1034
        %v1038 = vmul.f32 %v1032, %v1037
        %v1039 = vpack.c.bf16 %v1036, %v1038
        %v1040 = vunpack.c.h.bf16 %v1023
        %v1041 = vunpack.c.l.bf16 %v1023
        %v1042 = vrcp.pop %v1040
        %v1043 = vmul.f32 %v1031, %v1042
        %v1044 = vrcp.pop %v1041
        %v1045 = vmul.f32 %v1032, %v1044
        %v1046 = vpack.c.bf16 %v1043, %v1045
        %v1047 = vunpack.c.h.bf16 %v1024
        %v1048 = vunpack.c.l.bf16 %v1024
        %v1049 = vrcp.pop %v1047
        %v1050 = vmul.f32 %v1031, %v1049
        %v1051 = vrcp.pop %v1048
        %v1052 = vmul.f32 %v1032, %v1051
        %v1053 = vpack.c.bf16 %v1050, %v1052
        %v1054 = vunpack.c.h.bf16 %v1025
        %v1055 = vunpack.c.l.bf16 %v1025
        %v1056 = vrcp.pop %v1054
        %v1057 = vmul.f32 %v1031, %v1056
        %v1058 = vrcp.pop %v1055
        %v1059 = vmul.f32 %v1032, %v1058
        %v1060 = vpack.c.bf16 %v1057, %v1059
        %v1061 = vunpack.c.h.bf16 %v1026
        %v1062 = vunpack.c.l.bf16 %v1026
        %v1063 = vrcp.pop %v1061
        %v1064 = vmul.f32 %v1031, %v1063
        %v1065 = vrcp.pop %v1062
        %v1066 = vmul.f32 %v1032, %v1065
        %v1067 = vpack.c.bf16 %v1064, %v1066
        %v1068 = vunpack.c.h.bf16 %v1027
        %v1069 = vunpack.c.l.bf16 %v1027
        %v1070 = vrcp.pop %v1068
        %v1071 = vmul.f32 %v1031, %v1070
        %v1072 = vrcp.pop %v1069
        %v1073 = vmul.f32 %v1032, %v1072
        %v1074 = vpack.c.bf16 %v1071, %v1073
        %v1075 = vunpack.c.h.bf16 %v1028
        %v1076 = vunpack.c.l.bf16 %v1028
        %v1077 = vrcp.pop %v1075
        %v1078 = vmul.f32 %v1031, %v1077
        %v1079 = vrcp.pop %v1076
        %v1080 = vmul.f32 %v1032, %v1079
        %v1081 = vpack.c.bf16 %v1078, %v1080
        %v1082 = vunpack.c.h.bf16 %v1029
        %v1083 = vunpack.c.l.bf16 %v1029
        %v1084 = vrcp.pop %v1082
        %v1085 = vmul.f32 %v1031, %v1084
        %v1086 = vrcp.pop %v1083
        %v1087 = vmul.f32 %v1032, %v1086
        %v1088 = vpack.c.bf16 %v1085, %v1087
        %v1089 = vunpack.c.h.bf16 %v1030
        %v1090 = vunpack.c.l.bf16 %v1030
        %v1091 = vrcp.pop %v1089
        %v1092 = vmul.f32 %v1031, %v1091
        %v1093 = vrcp.pop %v1090
        %v1094 = vmul.f32 %v1032, %v1093
        %v1095 = vpack.c.bf16 %v1092, %v1094
        %v1096 = vunpack.c.l.bf16 %v950
        %v1097 = vunpack.c.l.bf16 %v951
        %v1098 = vunpack.c.l.bf16 %v952
        %v1099 = vunpack.c.l.bf16 %v953
        %v1100 = vunpack.c.l.bf16 %v954
        %v1101 = vunpack.c.l.bf16 %v955
        %v1102 = vunpack.c.l.bf16 %v956
        %v1103 = vunpack.c.l.bf16 %v957
        %v1104 = vunpack.c.l.bf16 %v958
        %v1105 = vunpack.c.l.bf16 %v1039
        %v1106 = vunpack.c.l.bf16 %v1046
        %v1107 = vunpack.c.l.bf16 %v1053
        %v1108 = vunpack.c.l.bf16 %v1060
        %v1109 = vunpack.c.l.bf16 %v1067
        %v1110 = vunpack.c.l.bf16 %v1074
        %v1111 = vunpack.c.l.bf16 %v1081
        %v1112 = vunpack.c.l.bf16 %v1088
        %v1113 = vunpack.c.l.bf16 %v1095
        %v1114 = vmul.f32 %v1096, %v1105
        %v1115 = vmul.f32 %v1097, %v1106
        %v1116 = vmul.f32 %v1098, %v1107
        %v1117 = vmul.f32 %v1099, %v1108
        %v1118 = vmul.f32 %v1100, %v1109
        %v1119 = vmul.f32 %v1101, %v1110
        %v1120 = vmul.f32 %v1102, %v1111
        %v1121 = vmul.f32 %v1103, %v1112
        %v1122 = vmul.f32 %v1104, %v1113
        %v1123 = vpack.c.bf16 %v1115, %v1114
        %v1124 = vpack.c.bf16 %v1117, %v1116
        %v1125 = vpack.c.bf16 %v1119, %v1118
        %v1126 = vpack.c.bf16 %v1121, %v1120
        %v1127 = vpack.c.bf16 %v1122, %v1122
        %v1128 = vld [vmem:[%s3] sm:$0xf]
        %v1129 = vld [vmem:[%s3 + $0x4] sm:$0xf]
        %v1130 = vld [vmem:[%s3 + $0x8] sm:$0xf]
        %v1131 = vld [vmem:[%s3 + $0xc] sm:$0xf]
        %v1132 = vld [vmem:[%s3 + $0x10] sm:$0xf]
        %v1133 = vld [vmem:[%s3 + $0x14] sm:$0xf]
        %v1134 = vld [vmem:[%s3 + $0x18] sm:$0xf]
        %v1135 = vld [vmem:[%s3 + $0x1c] sm:$0xf]
        %v1136 = vld [vmem:[%s3 + $0x20] sm:$0xf]
        %v1137 = vld [vmem:[%s3 + $0x24] sm:$0xf]
        %v1138 = vld [vmem:[%s3 + $0x28] sm:$0xf]
        %v1139 = vld [vmem:[%s3 + $0x2c] sm:$0xf]
        %v1140 = vld [vmem:[%s3 + $0x30] sm:$0xf]
        %v1141 = vld [vmem:[%s3 + $0x34] sm:$0xf]
        %v1142 = vld [vmem:[%s3 + $0x38] sm:$0xf]
        %v1143 = vld [vmem:[%s3 + $0x3c] sm:$0xf]
        %v1144 = vld [vmem:[%s4] sm:$0x1]
        %v1146 = vperm.slane %v1144, 0
        %v1164 = vunpack.c.l.b16 %v1128
        %v1165 = vunpack.c.l.b16 %v1129
        %v1166 = vunpack.c.l.b16 %v1130
        %v1167 = vunpack.c.l.b16 %v1131
        %v1168 = vunpack.c.l.b16 %v1132
        %v1169 = vunpack.c.l.b16 %v1133
        %v1170 = vunpack.c.l.b16 %v1134
        %v1171 = vunpack.c.l.b16 %v1135
        %v1172 = vunpack.c.l.b16 %v1136
        %v1173 = vunpack.c.l.b16 %v1137
        %v1174 = vunpack.c.l.b16 %v1138
        %v1175 = vunpack.c.l.b16 %v1139
        %v1176 = vunpack.c.l.b16 %v1140
        %v1177 = vunpack.c.l.b16 %v1141
        %v1178 = vunpack.c.l.b16 %v1142
        %v1179 = vunpack.c.l.b16 %v1143
        %v1180 = vpack.c.b16 %v1165, %v1164
        %v1181 = vpack.c.b16 %v1167, %v1166
        %v1182 = vpack.c.b16 %v1169, %v1168
        %v1183 = vpack.c.b16 %v1171, %v1170
        %v1184 = vpack.c.b16 %v1173, %v1172
        %v1185 = vpack.c.b16 %v1175, %v1174
        %v1186 = vpack.c.b16 %v1177, %v1176
        %v1187 = vpack.c.b16 %v1179, %v1178
        %1196 = vmatpush.bf16.msra.mxu0 %v1187
        %1197 = vmatpush.bf16.msra.mxu0 %v1186
        %1198 = vmatpush.bf16.msra.mxu0 %v1185
        %1199 = vmatpush.bf16.msra.mxu0 %v1184
        %1200 = vmatpush.bf16.msra.mxu0 %v1183
        %1201 = vmatpush.bf16.msra.mxu0 %v1182
        %1202 = vmatpush.bf16.msra.mxu0 %v1181
        %1203 = vmatpush.bf16.msra.mxu0 %v1180
        %1204 = vmatmul.bf16.gmra.mxu0 %v1123
        %v1205 = vpop.f32.mrf.mxu0
        %v1206 = vadd.f32 %v1146, %v1205
        %v1207 = vpop.f32.mrf.mxu0
        %v1208 = vadd.f32 %v1146, %v1207
        %1209 = vmatmul.bf16.gmra.mxu0 %v1124
        %v1210 = vpop.f32.mrf.mxu0
        %v1211 = vadd.f32 %v1146, %v1210
        %v1212 = vpop.f32.mrf.mxu0
        %v1213 = vadd.f32 %v1146, %v1212
        %1214 = vmatmul.bf16.gmra.mxu0 %v1125
        %v1215 = vpop.f32.mrf.mxu0
        %v1216 = vadd.f32 %v1146, %v1215
        %v1217 = vpop.f32.mrf.mxu0
        %v1218 = vadd.f32 %v1146, %v1217
        %1219 = vmatmul.bf16.gmra.mxu0 %v1126
        %v1220 = vpop.f32.mrf.mxu0
        %v1221 = vadd.f32 %v1146, %v1220
        %v1222 = vpop.f32.mrf.mxu0
        %v1223 = vadd.f32 %v1146, %v1222
        %1224 = vmatmul.bf16.gmra.mxu0 %v1127
        %v1225 = vpop.f32.mrf.mxu0
        %v1226 = vadd.f32 %v1146, %v1225
        %v1227 = vpop.f32.mrf.mxu0
        %1228 = vdwg.mxu0
        %v1229 = vpack.c.bf16 %v1206, %v1206
        %v1230 = vpack.c.bf16 %v1208, %v1208
        %v1231 = vpack.c.bf16 %v1211, %v1211
        %v1232 = vpack.c.bf16 %v1213, %v1213
        %v1233 = vpack.c.bf16 %v1216, %v1216
        %v1234 = vpack.c.bf16 %v1218, %v1218
        %v1235 = vpack.c.bf16 %v1221, %v1221
        %v1236 = vpack.c.bf16 %v1223, %v1223
        %v1237 = vpack.c.bf16 %v1226, %v1226
        %v1238 = vxor.u32 %v1229, 2147516416
        %v1239 = vxor.u32 %v1230, 2147516416
        %v1240 = vxor.u32 %v1231, 2147516416
        %v1241 = vxor.u32 %v1232, 2147516416
        %v1242 = vxor.u32 %v1233, 2147516416
        %v1243 = vxor.u32 %v1234, 2147516416
        %v1244 = vxor.u32 %v1235, 2147516416
        %v1245 = vxor.u32 %v1236, 2147516416
        %v1246 = vxor.u32 %v1237, 2147516416
        %v1247 = vunpack.c.l.bf16 %v1238
        %v1248 = vunpack.c.l.bf16 %v1239
        %v1249 = vunpack.c.l.bf16 %v1240
        %v1250 = vunpack.c.l.bf16 %v1241
        %v1251 = vunpack.c.l.bf16 %v1242
        %v1252 = vunpack.c.l.bf16 %v1243
        %v1253 = vunpack.c.l.bf16 %v1244
        %v1254 = vunpack.c.l.bf16 %v1245
        %v1255 = vunpack.c.l.bf16 %v1246
        %v1256 = vmul.f32 %v1247, 1.442695
        %v1257 = vpow.pop %v1256
        %v1258 = vmul.f32 %v1248, 1.442695
        %v1259 = vpow.pop %v1258
        %v1260 = vmul.f32 %v1249, 1.442695
        %v1261 = vpow.pop %v1260
        %v1262 = vmul.f32 %v1250, 1.442695
        %v1263 = vpow.pop %v1262
        %v1264 = vmul.f32 %v1251, 1.442695
        %v1265 = vpow.pop %v1264
        %v1266 = vmul.f32 %v1252, 1.442695
        %v1267 = vpow.pop %v1266
        %v1268 = vmul.f32 %v1253, 1.442695
        %v1269 = vpow.pop %v1268
        %v1270 = vmul.f32 %v1254, 1.442695
        %v1271 = vpow.pop %v1270
        %v1272 = vmul.f32 %v1255, 1.442695
        %v1273 = vpow.pop %v1272
        %v1274 = vpack.c.bf16 %v1257, %v1257
        %v1275 = vpack.c.bf16 %v1259, %v1259
        %v1276 = vpack.c.bf16 %v1261, %v1261
        %v1277 = vpack.c.bf16 %v1263, %v1263
        %v1278 = vpack.c.bf16 %v1265, %v1265
        %v1279 = vpack.c.bf16 %v1267, %v1267
        %v1280 = vpack.c.bf16 %v1269, %v1269
        %v1281 = vpack.c.bf16 %v1271, %v1271
        %v1282 = vpack.c.bf16 %v1273, %v1273
        %v1283 = vunpack.c.l.bf16 %v1274
        %v1284 = vunpack.c.l.bf16 %v1275
        %v1285 = vunpack.c.l.bf16 %v1276
        %v1286 = vunpack.c.l.bf16 %v1277
        %v1287 = vunpack.c.l.bf16 %v1278
        %v1288 = vunpack.c.l.bf16 %v1279
        %v1289 = vunpack.c.l.bf16 %v1280
        %v1290 = vunpack.c.l.bf16 %v1281
        %v1291 = vunpack.c.l.bf16 %v1282
        %v1292 = vadd.f32 %v1283, 1.0
        %v1293 = vadd.f32 %v1284, 1.0
        %v1294 = vadd.f32 %v1285, 1.0
        %v1295 = vadd.f32 %v1286, 1.0
        %v1296 = vadd.f32 %v1287, 1.0
        %v1297 = vadd.f32 %v1288, 1.0
        %v1298 = vadd.f32 %v1289, 1.0
        %v1299 = vadd.f32 %v1290, 1.0
        %v1300 = vadd.f32 %v1291, 1.0
        %v1301 = vpack.c.bf16 %v1292, %v1292
        %v1302 = vpack.c.bf16 %v1293, %v1293
        %v1303 = vpack.c.bf16 %v1294, %v1294
        %v1304 = vpack.c.bf16 %v1295, %v1295
        %v1305 = vpack.c.bf16 %v1296, %v1296
        %v1306 = vpack.c.bf16 %v1297, %v1297
        %v1307 = vpack.c.bf16 %v1298, %v1298
        %v1308 = vpack.c.bf16 %v1299, %v1299
        %v1309 = vpack.c.bf16 %v1300, %v1300
        %v1310 = vunpack.c.h.bf16 %v1301
        %v1311 = vunpack.c.l.bf16 %v1301
        %v1312 = vrcp.pop %v1310
        %v1313 = vmul.f32 %v1031, %v1312
        %v1314 = vrcp.pop %v1311
        %v1315 = vmul.f32 %v1032, %v1314
        %v1316 = vpack.c.bf16 %v1313, %v1315
        %v1317 = vunpack.c.h.bf16 %v1302
        %v1318 = vunpack.c.l.bf16 %v1302
        %v1319 = vrcp.pop %v1317
        %v1320 = vmul.f32 %v1031, %v1319
        %v1321 = vrcp.pop %v1318
        %v1322 = vmul.f32 %v1032, %v1321
        %v1323 = vpack.c.bf16 %v1320, %v1322
        %v1324 = vunpack.c.h.bf16 %v1303
        %v1325 = vunpack.c.l.bf16 %v1303
        %v1326 = vrcp.pop %v1324
        %v1327 = vmul.f32 %v1031, %v1326
        %v1328 = vrcp.pop %v1325
        %v1329 = vmul.f32 %v1032, %v1328
        %v1330 = vpack.c.bf16 %v1327, %v1329
        %v1331 = vunpack.c.h.bf16 %v1304
        %v1332 = vunpack.c.l.bf16 %v1304
        %v1333 = vrcp.pop %v1331
        %v1334 = vmul.f32 %v1031, %v1333
        %v1335 = vrcp.pop %v1332
        %v1336 = vmul.f32 %v1032, %v1335
        %v1337 = vpack.c.bf16 %v1334, %v1336
        %v1338 = vunpack.c.h.bf16 %v1305
        %v1339 = vunpack.c.l.bf16 %v1305
        %v1340 = vrcp.pop %v1338
        %v1341 = vmul.f32 %v1031, %v1340
        %v1342 = vrcp.pop %v1339
        %v1343 = vmul.f32 %v1032, %v1342
        %v1344 = vpack.c.bf16 %v1341, %v1343
        %v1345 = vunpack.c.h.bf16 %v1306
        %v1346 = vunpack.c.l.bf16 %v1306
        %v1347 = vrcp.pop %v1345
        %v1348 = vmul.f32 %v1031, %v1347
        %v1349 = vrcp.pop %v1346
        %v1350 = vmul.f32 %v1032, %v1349
        %v1351 = vpack.c.bf16 %v1348, %v1350
        %v1352 = vunpack.c.h.bf16 %v1307
        %v1353 = vunpack.c.l.bf16 %v1307
        %v1354 = vrcp.pop %v1352
        %v1355 = vmul.f32 %v1031, %v1354
        %v1356 = vrcp.pop %v1353
        %v1357 = vmul.f32 %v1032, %v1356
        %v1358 = vpack.c.bf16 %v1355, %v1357
        %v1359 = vunpack.c.h.bf16 %v1308
        %v1360 = vunpack.c.l.bf16 %v1308
        %v1361 = vrcp.pop %v1359
        %v1362 = vmul.f32 %v1031, %v1361
        %v1363 = vrcp.pop %v1360
        %v1364 = vmul.f32 %v1032, %v1363
        %v1365 = vpack.c.bf16 %v1362, %v1364
        %v1366 = vunpack.c.h.bf16 %v1309
        %v1367 = vunpack.c.l.bf16 %v1309
        %v1368 = vrcp.pop %v1366
        %v1369 = vmul.f32 %v1031, %v1368
        %v1370 = vrcp.pop %v1367
        %v1371 = vmul.f32 %v1032, %v1370
        %v1372 = vpack.c.bf16 %v1369, %v1371
        %v1373 = vunpack.c.l.bf16 %v1229
        %v1374 = vunpack.c.l.bf16 %v1230
        %v1375 = vunpack.c.l.bf16 %v1231
        %v1376 = vunpack.c.l.bf16 %v1232
        %v1377 = vunpack.c.l.bf16 %v1233
        %v1378 = vunpack.c.l.bf16 %v1234
        %v1379 = vunpack.c.l.bf16 %v1235
        %v1380 = vunpack.c.l.bf16 %v1236
        %v1381 = vunpack.c.l.bf16 %v1237
        %v1382 = vunpack.c.l.bf16 %v1316
        %v1383 = vunpack.c.l.bf16 %v1323
        %v1384 = vunpack.c.l.bf16 %v1330
        %v1385 = vunpack.c.l.bf16 %v1337
        %v1386 = vunpack.c.l.bf16 %v1344
        %v1387 = vunpack.c.l.bf16 %v1351
        %v1388 = vunpack.c.l.bf16 %v1358
        %v1389 = vunpack.c.l.bf16 %v1365
        %v1390 = vunpack.c.l.bf16 %v1372
        %v1391 = vmul.f32 %v1373, %v1382
        %v1392 = vmul.f32 %v1374, %v1383
        %v1393 = vmul.f32 %v1375, %v1384
        %v1394 = vmul.f32 %v1376, %v1385
        %v1395 = vmul.f32 %v1377, %v1386
        %v1396 = vmul.f32 %v1378, %v1387
        %v1397 = vmul.f32 %v1379, %v1388
        %v1398 = vmul.f32 %v1380, %v1389
        %v1399 = vmul.f32 %v1381, %v1390
        %v1400 = vpack.c.bf16 %v1391, %v1391
        %v1401 = vpack.c.bf16 %v1392, %v1392
        %v1402 = vpack.c.bf16 %v1393, %v1393
        %v1403 = vpack.c.bf16 %v1394, %v1394
        %v1404 = vpack.c.bf16 %v1395, %v1395
        %v1405 = vpack.c.bf16 %v1396, %v1396
        %v1406 = vpack.c.bf16 %v1397, %v1397
        %v1407 = vpack.c.bf16 %v1398, %v1398
        %v1408 = vpack.c.bf16 %v1399, %v1399
        %v1409 = vlaneseq
        %v1410 = vshrl.u32 %v1409, 7
        %v1411 = vadd.s32 %v1410, 8
        %v1412 = vadd.s32 %v1410, 16
        %v1413 = vadd.s32 %v1410, 24
        %v1414 = vadd.s32 %v1410, 32
        %v1415 = vadd.s32 %v1410, 40
        %v1416 = vadd.s32 %v1410, 48
        %v1417 = vadd.s32 %v1410, 56
        %v1418 = vadd.s32 %v1410, 64
        %vm1419 = vcmp.lt.s32.totalorder %v1410, 0
        %v1420 = vsub.s32 0, %v1410
        %v1421 = vsel %vm1419, %v1420, %v1410
        %v1422 = vand.u32 %v1421, 65535
        %v1423 = vshrl.u32 %v1421, 16
        %v1425 = vmul.u32 %v1422, 14564
        %v1426 = vmul.u32 %v1422, 58254
        %v1427 = vmul.u32 %v1423, 14564
        %v1428 = vmul.u32 %v1423, 58254
        %v1429 = vshll.u32 %v1426, 16
        %v1430 = vshrl.u32 %v1426, 16
        %v1431 = vshll.u32 %v1427, 16
        %v1432 = vshrl.u32 %v1427, 16
        %vm1433 = vc.u32 %v1425, %v1429
        %v1434 = vsel %vm1433, 1, 0
        %v1435 = vadd.s32 %v1425, %v1429
        %v1436 = vadd.s32 %v1428, %v1434
        %vm1437 = vc.u32 %v1435, %v1431
        %v1438 = vsel %vm1437, 1, 0
        %v1439 = vadd.s32 %v1435, %v1431
        %v1440 = vadd.s32 %v1436, %v1438
        %v1441 = vadd.s32 %v1440, %v1430
        %v1442 = vadd.s32 %v1441, %v1432
        %v1443 = vshrl.u32 %v1442, 3
        %v1444 = vmul.u32 %v1443, 9
        %v1445 = vsub.s32 %v1421, %v1444
        %v1446 = vsub.s32 0, %v1445
        %v1447 = vsel %vm1419, %v1446, %v1445
        %vm1448 = vcmp.lt.s32.totalorder %v1411, 0
        %v1449 = vsub.s32 0, %v1411
        %v1450 = vsel %vm1448, %v1449, %v1411
        %v1451 = vand.u32 %v1450, 65535
        %v1452 = vshrl.u32 %v1450, 16
        %v1454 = vmul.u32 %v1451, 14564
        %v1455 = vmul.u32 %v1451, 58254
        %v1456 = vmul.u32 %v1452, 14564
        %v1457 = vmul.u32 %v1452, 58254
        %v1458 = vshll.u32 %v1455, 16
        %v1459 = vshrl.u32 %v1455, 16
        %v1460 = vshll.u32 %v1456, 16
        %v1461 = vshrl.u32 %v1456, 16
        %vm1462 = vc.u32 %v1454, %v1458
        %v1463 = vsel %vm1462, 1, 0
        %v1464 = vadd.s32 %v1454, %v1458
        %v1465 = vadd.s32 %v1457, %v1463
        %vm1466 = vc.u32 %v1464, %v1460
        %v1467 = vsel %vm1466, 1, 0
        %v1468 = vadd.s32 %v1464, %v1460
        %v1469 = vadd.s32 %v1465, %v1467
        %v1470 = vadd.s32 %v1469, %v1459
        %v1471 = vadd.s32 %v1470, %v1461
        %v1472 = vshrl.u32 %v1471, 3
        %v1473 = vmul.u32 %v1472, 9
        %v1474 = vsub.s32 %v1450, %v1473
        %v1475 = vsub.s32 0, %v1474
        %v1476 = vsel %vm1448, %v1475, %v1474
        %vm1477 = vcmp.lt.s32.totalorder %v1412, 0
        %v1478 = vsub.s32 0, %v1412
        %v1479 = vsel %vm1477, %v1478, %v1412
        %v1480 = vand.u32 %v1479, 65535
        %v1481 = vshrl.u32 %v1479, 16
        %v1483 = vmul.u32 %v1480, 14564
        %v1484 = vmul.u32 %v1480, 58254
        %v1485 = vmul.u32 %v1481, 14564
        %v1486 = vmul.u32 %v1481, 58254
        %v1487 = vshll.u32 %v1484, 16
        %v1488 = vshrl.u32 %v1484, 16
        %v1489 = vshll.u32 %v1485, 16
        %v1490 = vshrl.u32 %v1485, 16
        %vm1491 = vc.u32 %v1483, %v1487
        %v1492 = vsel %vm1491, 1, 0
        %v1493 = vadd.s32 %v1483, %v1487
        %v1494 = vadd.s32 %v1486, %v1492
        %vm1495 = vc.u32 %v1493, %v1489
        %v1496 = vsel %vm1495, 1, 0
        %v1497 = vadd.s32 %v1493, %v1489
        %v1498 = vadd.s32 %v1494, %v1496
        %v1499 = vadd.s32 %v1498, %v1488
        %v1500 = vadd.s32 %v1499, %v1490
        %v1501 = vshrl.u32 %v1500, 3
        %v1502 = vmul.u32 %v1501, 9
        %v1503 = vsub.s32 %v1479, %v1502
        %v1504 = vsub.s32 0, %v1503
        %v1505 = vsel %vm1477, %v1504, %v1503
        %vm1506 = vcmp.lt.s32.totalorder %v1413, 0
        %v1507 = vsub.s32 0, %v1413
        %v1508 = vsel %vm1506, %v1507, %v1413
        %v1509 = vand.u32 %v1508, 65535
        %v1510 = vshrl.u32 %v1508, 16
        %v1512 = vmul.u32 %v1509, 14564
        %v1513 = vmul.u32 %v1509, 58254
        %v1514 = vmul.u32 %v1510, 14564
        %v1515 = vmul.u32 %v1510, 58254
        %v1516 = vshll.u32 %v1513, 16
        %v1517 = vshrl.u32 %v1513, 16
        %v1518 = vshll.u32 %v1514, 16
        %v1519 = vshrl.u32 %v1514, 16
        %vm1520 = vc.u32 %v1512, %v1516
        %v1521 = vsel %vm1520, 1, 0
        %v1522 = vadd.s32 %v1512, %v1516
        %v1523 = vadd.s32 %v1515, %v1521
        %vm1524 = vc.u32 %v1522, %v1518
        %v1525 = vsel %vm1524, 1, 0
        %v1526 = vadd.s32 %v1522, %v1518
        %v1527 = vadd.s32 %v1523, %v1525
        %v1528 = vadd.s32 %v1527, %v1517
        %v1529 = vadd.s32 %v1528, %v1519
        %v1530 = vshrl.u32 %v1529, 3
        %v1531 = vmul.u32 %v1530, 9
        %v1532 = vsub.s32 %v1508, %v1531
        %v1533 = vsub.s32 0, %v1532
        %v1534 = vsel %vm1506, %v1533, %v1532
        %vm1535 = vcmp.lt.s32.totalorder %v1414, 0
        %v1536 = vsub.s32 0, %v1414
        %v1537 = vsel %vm1535, %v1536, %v1414
        %v1538 = vand.u32 %v1537, 65535
        %v1539 = vshrl.u32 %v1537, 16
        %v1541 = vmul.u32 %v1538, 14564
        %v1542 = vmul.u32 %v1538, 58254
        %v1543 = vmul.u32 %v1539, 14564
        %v1544 = vmul.u32 %v1539, 58254
        %v1545 = vshll.u32 %v1542, 16
        %v1546 = vshrl.u32 %v1542, 16
        %v1547 = vshll.u32 %v1543, 16
        %v1548 = vshrl.u32 %v1543, 16
        %vm1549 = vc.u32 %v1541, %v1545
        %v1550 = vsel %vm1549, 1, 0
        %v1551 = vadd.s32 %v1541, %v1545
        %v1552 = vadd.s32 %v1544, %v1550
        %vm1553 = vc.u32 %v1551, %v1547
        %v1554 = vsel %vm1553, 1, 0
        %v1555 = vadd.s32 %v1551, %v1547
        %v1556 = vadd.s32 %v1552, %v1554
        %v1557 = vadd.s32 %v1556, %v1546
        %v1558 = vadd.s32 %v1557, %v1548
        %v1559 = vshrl.u32 %v1558, 3
        %v1560 = vmul.u32 %v1559, 9
        %v1561 = vsub.s32 %v1537, %v1560
        %v1562 = vsub.s32 0, %v1561
        %v1563 = vsel %vm1535, %v1562, %v1561
        %vm1564 = vcmp.lt.s32.totalorder %v1415, 0
        %v1565 = vsub.s32 0, %v1415
        %v1566 = vsel %vm1564, %v1565, %v1415
        %v1567 = vand.u32 %v1566, 65535
        %v1568 = vshrl.u32 %v1566, 16
        %v1570 = vmul.u32 %v1567, 14564
        %v1571 = vmul.u32 %v1567, 58254
        %v1572 = vmul.u32 %v1568, 14564
        %v1573 = vmul.u32 %v1568, 58254
        %v1574 = vshll.u32 %v1571, 16
        %v1575 = vshrl.u32 %v1571, 16
        %v1576 = vshll.u32 %v1572, 16
        %v1577 = vshrl.u32 %v1572, 16
        %vm1578 = vc.u32 %v1570, %v1574
        %v1579 = vsel %vm1578, 1, 0
        %v1580 = vadd.s32 %v1570, %v1574
        %v1581 = vadd.s32 %v1573, %v1579
        %vm1582 = vc.u32 %v1580, %v1576
        %v1583 = vsel %vm1582, 1, 0
        %v1584 = vadd.s32 %v1580, %v1576
        %v1585 = vadd.s32 %v1581, %v1583
        %v1586 = vadd.s32 %v1585, %v1575
        %v1587 = vadd.s32 %v1586, %v1577
        %v1588 = vshrl.u32 %v1587, 3
        %v1589 = vmul.u32 %v1588, 9
        %v1590 = vsub.s32 %v1566, %v1589
        %v1591 = vsub.s32 0, %v1590
        %v1592 = vsel %vm1564, %v1591, %v1590
        %vm1593 = vcmp.lt.s32.totalorder %v1416, 0
        %v1594 = vsub.s32 0, %v1416
        %v1595 = vsel %vm1593, %v1594, %v1416
        %v1596 = vand.u32 %v1595, 65535
        %v1597 = vshrl.u32 %v1595, 16
        %v1599 = vmul.u32 %v1596, 14564
        %v1600 = vmul.u32 %v1596, 58254
        %v1601 = vmul.u32 %v1597, 14564
        %v1602 = vmul.u32 %v1597, 58254
        %v1603 = vshll.u32 %v1600, 16
        %v1604 = vshrl.u32 %v1600, 16
        %v1605 = vshll.u32 %v1601, 16
        %v1606 = vshrl.u32 %v1601, 16
        %vm1607 = vc.u32 %v1599, %v1603
        %v1608 = vsel %vm1607, 1, 0
        %v1609 = vadd.s32 %v1599, %v1603
        %v1610 = vadd.s32 %v1602, %v1608
        %vm1611 = vc.u32 %v1609, %v1605
        %v1612 = vsel %vm1611, 1, 0
        %v1613 = vadd.s32 %v1609, %v1605
        %v1614 = vadd.s32 %v1610, %v1612
        %v1615 = vadd.s32 %v1614, %v1604
        %v1616 = vadd.s32 %v1615, %v1606
        %v1617 = vshrl.u32 %v1616, 3
        %v1618 = vmul.u32 %v1617, 9
        %v1619 = vsub.s32 %v1595, %v1618
        %v1620 = vsub.s32 0, %v1619
        %v1621 = vsel %vm1593, %v1620, %v1619
        %vm1622 = vcmp.lt.s32.totalorder %v1417, 0
        %v1623 = vsub.s32 0, %v1417
        %v1624 = vsel %vm1622, %v1623, %v1417
        %v1625 = vand.u32 %v1624, 65535
        %v1626 = vshrl.u32 %v1624, 16
        %v1628 = vmul.u32 %v1625, 14564
        %v1629 = vmul.u32 %v1625, 58254
        %v1630 = vmul.u32 %v1626, 14564
        %v1631 = vmul.u32 %v1626, 58254
        %v1632 = vshll.u32 %v1629, 16
        %v1633 = vshrl.u32 %v1629, 16
        %v1634 = vshll.u32 %v1630, 16
        %v1635 = vshrl.u32 %v1630, 16
        %vm1636 = vc.u32 %v1628, %v1632
        %v1637 = vsel %vm1636, 1, 0
        %v1638 = vadd.s32 %v1628, %v1632
        %v1639 = vadd.s32 %v1631, %v1637
        %vm1640 = vc.u32 %v1638, %v1634
        %v1641 = vsel %vm1640, 1, 0
        %v1642 = vadd.s32 %v1638, %v1634
        %v1643 = vadd.s32 %v1639, %v1641
        %v1644 = vadd.s32 %v1643, %v1633
        %v1645 = vadd.s32 %v1644, %v1635
        %v1646 = vshrl.u32 %v1645, 3
        %v1647 = vmul.u32 %v1646, 9
        %v1648 = vsub.s32 %v1624, %v1647
        %v1649 = vsub.s32 0, %v1648
        %v1650 = vsel %vm1622, %v1649, %v1648
        %vm1651 = vcmp.lt.s32.totalorder %v1418, 0
        %v1652 = vsub.s32 0, %v1418
        %v1653 = vsel %vm1651, %v1652, %v1418
        %v1654 = vand.u32 %v1653, 65535
        %v1655 = vshrl.u32 %v1653, 16
        %v1657 = vmul.u32 %v1654, 14564
        %v1658 = vmul.u32 %v1654, 58254
        %v1659 = vmul.u32 %v1655, 14564
        %v1660 = vmul.u32 %v1655, 58254
        %v1661 = vshll.u32 %v1658, 16
        %v1662 = vshrl.u32 %v1658, 16
        %v1663 = vshll.u32 %v1659, 16
        %v1664 = vshrl.u32 %v1659, 16
        %vm1665 = vc.u32 %v1657, %v1661
        %v1666 = vsel %vm1665, 1, 0
        %v1667 = vadd.s32 %v1657, %v1661
        %v1668 = vadd.s32 %v1660, %v1666
        %vm1669 = vc.u32 %v1667, %v1663
        %v1670 = vsel %vm1669, 1, 0
        %v1671 = vadd.s32 %v1667, %v1663
        %v1672 = vadd.s32 %v1668, %v1670
        %v1673 = vadd.s32 %v1672, %v1662
        %v1674 = vadd.s32 %v1673, %v1664
        %v1675 = vshrl.u32 %v1674, 3
        %v1676 = vmul.u32 %v1675, 9
        %v1677 = vsub.s32 %v1653, %v1676
        %v1678 = vsub.s32 0, %v1677
        %v1679 = vsel %vm1651, %v1678, %v1677
        %vm1680 = vcmp.ne.s32.totalorder %v1447, 0
        %vm1681 = vcmp.ne.s32.totalorder %v1476, 0
        %vm1682 = vcmp.ne.s32.totalorder %v1505, 0
        %vm1683 = vcmp.ne.s32.totalorder %v1534, 0
        %vm1684 = vcmp.ne.s32.totalorder %v1563, 0
        %vm1685 = vcmp.ne.s32.totalorder %v1592, 0
        %vm1686 = vcmp.ne.s32.totalorder %v1621, 0
        %vm1687 = vcmp.ne.s32.totalorder %v1650, 0
        %vm1688 = vcmp.ne.s32.totalorder %v1679, 0
        %vm1689 = vcmp.lt.s32.totalorder %v1447, 0
        %vm1690 = vcmp.lt.s32.totalorder %v1476, 0
        %vm1691 = vcmp.lt.s32.totalorder %v1505, 0
        %vm1692 = vcmp.lt.s32.totalorder %v1534, 0
        %vm1693 = vcmp.lt.s32.totalorder %v1563, 0
        %vm1694 = vcmp.lt.s32.totalorder %v1592, 0
        %vm1695 = vcmp.lt.s32.totalorder %v1621, 0
        %vm1696 = vcmp.lt.s32.totalorder %v1650, 0
        %vm1697 = vcmp.lt.s32.totalorder %v1679, 0
        %vm1698 = vmand %vm1689, %vm1680
        %vm1699 = vmand %vm1690, %vm1681
        %vm1700 = vmand %vm1691, %vm1682
        %vm1701 = vmand %vm1692, %vm1683
        %vm1702 = vmand %vm1693, %vm1684
        %vm1703 = vmand %vm1694, %vm1685
        %vm1704 = vmand %vm1695, %vm1686
        %vm1705 = vmand %vm1696, %vm1687
        %vm1706 = vmand %vm1697, %vm1688
        %v1707 = vadd.s32 %v1447, 9
        %v1708 = vadd.s32 %v1476, 9
        %v1709 = vadd.s32 %v1505, 9
        %v1710 = vadd.s32 %v1534, 9
        %v1711 = vadd.s32 %v1563, 9
        %v1712 = vadd.s32 %v1592, 9
        %v1713 = vadd.s32 %v1621, 9
        %v1714 = vadd.s32 %v1650, 9
        %v1715 = vadd.s32 %v1679, 9
        %v1716 = vsel %vm1698, %v1707, %v1447
        %v1717 = vsel %vm1699, %v1708, %v1476
        %v1718 = vsel %vm1700, %v1709, %v1505
        %v1719 = vsel %vm1701, %v1710, %v1534
        %v1720 = vsel %vm1702, %v1711, %v1563
        %v1721 = vsel %vm1703, %v1712, %v1592
        %v1722 = vsel %vm1704, %v1713, %v1621
        %v1723 = vsel %vm1705, %v1714, %v1650
        %v1724 = vsel %vm1706, %v1715, %v1679
        %vm1725 = vcmp.lt.s32.totalorder %v1716, 8
        %vm1726 = vcmp.lt.s32.totalorder %v1717, 8
        %vm1727 = vcmp.lt.s32.totalorder %v1718, 8
        %vm1728 = vcmp.lt.s32.totalorder %v1719, 8
        %vm1729 = vcmp.lt.s32.totalorder %v1720, 8
        %vm1730 = vcmp.lt.s32.totalorder %v1721, 8
        %vm1731 = vcmp.lt.s32.totalorder %v1722, 8
        %vm1732 = vcmp.lt.s32.totalorder %v1723, 8
        %vm1733 = vcmp.lt.s32.totalorder %v1724, 8
        %v1734 = vunpack.c.l.bf16 %v1400
        %v1735 = vunpack.c.l.bf16 %v1401
        %v1736 = vunpack.c.l.bf16 %v1402
        %v1737 = vunpack.c.l.bf16 %v1403
        %v1738 = vunpack.c.l.bf16 %v1404
        %v1739 = vunpack.c.l.bf16 %v1405
        %v1740 = vunpack.c.l.bf16 %v1406
        %v1741 = vunpack.c.l.bf16 %v1407
        %v1742 = vunpack.c.l.bf16 %v1408
        %v1743 = vsel %vm1725, 1, 0
        %v1744 = vsel %vm1726, 1, 0
        %v1745 = vsel %vm1727, 1, 0
        %v1746 = vsel %vm1728, 1, 0
        %v1747 = vsel %vm1729, 1, 0
        %v1748 = vsel %vm1730, 1, 0
        %v1749 = vsel %vm1731, 1, 0
        %v1750 = vsel %vm1732, 1, 0
        %v1751 = vsel %vm1733, 1, 0
        %vm1752 = vcmp.eq.s32.totalorder %v1743, 1
        %vm1753 = vcmp.eq.s32.totalorder %v1744, 1
        %vm1754 = vcmp.eq.s32.totalorder %v1745, 1
        %vm1755 = vcmp.eq.s32.totalorder %v1746, 1
        %vm1756 = vcmp.eq.s32.totalorder %v1747, 1
        %vm1757 = vcmp.eq.s32.totalorder %v1748, 1
        %vm1758 = vcmp.eq.s32.totalorder %v1749, 1
        %vm1759 = vcmp.eq.s32.totalorder %v1750, 1
        %vm1760 = vcmp.eq.s32.totalorder %v1751, 1
        %v1761 = vsel %vm1752, %v1734, -inf
        %v1762 = vsel %vm1753, %v1735, -inf
        %v1763 = vsel %vm1754, %v1736, -inf
        %v1764 = vsel %vm1755, %v1737, -inf
        %v1765 = vsel %vm1756, %v1738, -inf
        %v1766 = vsel %vm1757, %v1739, -inf
        %v1767 = vsel %vm1758, %v1740, -inf
        %v1768 = vsel %vm1759, %v1741, -inf
        %v1769 = vsel %vm1760, %v1742, -inf
        %v1770 = vmax.f32 %v1761, %v1765
        %v1771 = vmax.f32 %v1762, %v1766
        %v1772 = vmax.f32 %v1763, %v1767
        %v1773 = vmax.f32 %v1764, %v1768
        %v1774 = vmax.f32 %v1770, %v1769
        %v1775 = vmax.f32 %v1774, %v1771
        %v1776 = vmax.f32 %v1772, %v1773
        %v1777 = vmax.f32 %v1775, %v1776
        %v1778 = vrot.slane %v1777, 4
        %v1779 = vmax.f32 %v1777, %v1778
        %v1780 = vrot.slane %v1779, 2
        %v1781 = vmax.f32 %v1779, %v1780
        %v1782 = vrot.slane %v1781, 1
        %v1783 = vmax.f32 %v1781, %v1782
        %v1784 = vpack.c.bf16 %v1783, %v1783
        %v1785 = vld [vmem:[%s5] sm:$0xf]
        %v1786 = vld [vmem:[%s5 + $0x4] sm:$0xf]
        %v1787 = vld [vmem:[%s5 + $0x8] sm:$0xf]
        %v1788 = vld [vmem:[%s5 + $0xc] sm:$0xf]
        %v1789 = vld [vmem:[%s5 + $0x10] sm:$0xf]
        %v1790 = vld [vmem:[%s5 + $0x14] sm:$0xf]
        %v1791 = vld [vmem:[%s5 + $0x18] sm:$0xf]
        %v1792 = vld [vmem:[%s5 + $0x1c] sm:$0xf]
        %v1793 = vld [vmem:[%s5 + $0x20] sm:$0xf]
        %v1794 = vld [vmem:[%s5 + $0x24] sm:$0xf]
        %v1795 = vld [vmem:[%s5 + $0x28] sm:$0xf]
        %v1796 = vld [vmem:[%s5 + $0x2c] sm:$0xf]
        %v1797 = vld [vmem:[%s5 + $0x30] sm:$0xf]
        %v1798 = vld [vmem:[%s5 + $0x34] sm:$0xf]
        %v1799 = vld [vmem:[%s5 + $0x38] sm:$0xf]
        %v1800 = vld [vmem:[%s5 + $0x3c] sm:$0xf]
        %v1801 = vld [vmem:[%s6] sm:$0x1]
        %v1818 = vunpack.c.l.b16 %v1785
        %v1819 = vunpack.c.l.b16 %v1786
        %v1820 = vunpack.c.l.b16 %v1787
        %v1821 = vunpack.c.l.b16 %v1788
        %v1822 = vunpack.c.l.b16 %v1789
        %v1823 = vunpack.c.l.b16 %v1790
        %v1824 = vunpack.c.l.b16 %v1791
        %v1825 = vunpack.c.l.b16 %v1792
        %v1826 = vunpack.c.l.b16 %v1793
        %v1827 = vunpack.c.l.b16 %v1794
        %v1828 = vunpack.c.l.b16 %v1795
        %v1829 = vunpack.c.l.b16 %v1796
        %v1830 = vunpack.c.l.b16 %v1797
        %v1831 = vunpack.c.l.b16 %v1798
        %v1832 = vunpack.c.l.b16 %v1799
        %v1833 = vunpack.c.l.b16 %v1800
        %v1834 = vpack.c.b16 %v1819, %v1818
        %v1835 = vpack.c.b16 %v1821, %v1820
        %v1836 = vpack.c.b16 %v1823, %v1822
        %v1837 = vpack.c.b16 %v1825, %v1824
        %v1838 = vpack.c.b16 %v1827, %v1826
        %v1839 = vpack.c.b16 %v1829, %v1828
        %v1840 = vpack.c.b16 %v1831, %v1830
        %v1841 = vpack.c.b16 %v1833, %v1832
        %1850 = vmatpush.bf16.msra.mxu0 %v1841
        %1851 = vmatpush.bf16.msra.mxu0 %v1840
        %1852 = vmatpush.bf16.msra.mxu0 %v1839
        %1853 = vmatpush.bf16.msra.mxu0 %v1838
        %1854 = vmatpush.bf16.msra.mxu0 %v1837
        %1855 = vmatpush.bf16.msra.mxu0 %v1836
        %1856 = vmatpush.bf16.msra.mxu0 %v1835
        %1857 = vmatpush.bf16.msra.mxu0 %v1834
        %1858 = vmatmul.bf16.gmra.mxu0 %v1784
        %v1859 = vpop.f32.mrf.mxu0
        %v1860 = vadd.f32 %v1801, %v1859
        %v1861 = vpop.f32.mrf.mxu0
        %1862 = vdwg.mxu0
        %1863 = vst [vmem:[%s270] sm:$0x1] %v1860
        %s1864 = sand.u32 %s181, 1
        %s1865 = scalar_lea.sflag [#allocation3], %s1864
        %s1866 = sand.u32 %s181, 1
        %s1867 = scalar_lea.vmem [#allocation2], %s1866
        // Predicated region
        $region49: #{img_model_forward.1} parent=47 // pred_check
          %p1868 = pneg %p191
        $region50: #{img_model_forward.1} parent=47 // pred_check_branch
          %1870 = sbr.rel (%p1868) target = $region52
        $region51: #{img_model_forward.1} parent=47 // pred_region
          %1872 = vsyncadd %s1865, 0
          %s1873 = scalar_lea.hbm %s7, %s21
          %s1875 = sshll.u32 %s1867, 4
          %s1876 = int_to_ptr.vmem [resolvable:$true] %s1875
          %s1877 = sshll.u32 %s1873, 4
          %s1878 = int_to_ptr.hbm [resolvable:$true] %s1877
          %1880 = dma.vmem_to_hbm [thread:$0]  %s1876, 16, %s1878, %s1865
        $region52: #{img_model_forward.1} parent=47 // pred_fallthru
          _
      $region48: #{img_model_forward.1} parent=5 // pred_fallthru
        _
      %p1881 = scmp.le.s32.totalorder 2, %s16
      // Predicated region
      $region53: #{img_model_forward.1} parent=5 // pred_check
        %p1882 = pneg %p1881
      $region54: #{img_model_forward.1} parent=5 // pred_check_branch
        %1884 = sbr.rel (%p1882) target = $region56
      $region55: #{img_model_forward.1} parent=5 // pred_region
        %s1885 = ssub.s32 %s16, 2
        // Predicated region
        $region57: #{img_model_forward.1} parent=55 // pred_check
          %p1886 = pneg %p197
        $region58: #{img_model_forward.1} parent=55 // pred_check_branch
          %1888 = sbr.rel (%p1886) target = $region60
        $region59: #{img_model_forward.1} parent=55 // pred_region
          %s1889 = sand.u32 %s182, 1
          %s1890 = scalar_lea.sflag [#allocation3], %s1889
          %s1891 = sand.u32 %s182, 1
          %s1892 = scalar_lea.vmem [#allocation2], %s1891
          %1894 = dma.done %s1890, 16
        $region60: #{img_model_forward.1} parent=55 // pred_fallthru
          _
      $region56: #{img_model_forward.1} parent=5 // pred_fallthru
        _
    $region6: #{img_model_forward.1} parent=1 // loop_footer
      %s20 = sadd.s32 1, %s16
    $region7: #{img_model_forward.1} parent=1 // loop_footer_branch
      %15 = sbr.rel target = $region3
    $region8: #{img_model_forward.1} parent=1 // loop_exit
      _
    %1895 = vsyncpa [#allocation3], 1
    %s1896 = scalar_lea.sflag [#allocation3], 1
    %1897 = vsyncpa %s1896, 1

</llo_original>
